<compile_context>
chip_gen: v5e
topology: v5e:2x2
jax: 0.10.0
libtpu: 0.0.40
codegen_flags: <defaults>
</compile_context>

<pallas_src>
import functools

import jax
import jax.numpy as jnp
from jax.experimental import pallas as pl
from jax.experimental.pallas import tpu as pltpu


_PALLAS_MIN_ELEMS = 65536       # below this, one small XLA fusion wins
_TARGET_STEP_BYTES = 4 << 20    # ~4 MiB of input DMA per grid step
_MAX_TILE_ROWS = 2048           # keeps 2x-buffered blocks + temps << 32 MiB


def _round_down8(x):
    return max(8, (x // 8) * 8)


def _detect_num_tensorcores():
    """Best-effort TensorCore count (1 on v5e/v6e, 2 on v7x). Safe default 1."""
    try:
        info = pltpu.get_tpu_info()
    except Exception:
        return 1
    for attr in ("num_cores", "num_tensorcores", "num_tensor_cores",
                 "tensorcore_count", "core_count", "num_cores_per_chip"):
        v = getattr(info, attr, None)
        if isinstance(v, int) and v > 0:
            return v
    return 1


def _iel_kernel(k_ref, *args, num_inputs, interleaved, n_valid_flat,
                num_tiles, tiles_per_core, tile_rows):
    in_refs = args[:num_inputs]          # K lane-dense (tile_rows, 128) blocks
    out_ref = args[num_inputs]           # (1, tile_rows, 128) per-core partials
    acc_ref = args[num_inputs + 1]       # (tile_rows, 128) f32 accumulator

    c = pl.program_id(0)                 # core-split index
    i = pl.program_id(1)                 # tile index within this core's range

    @pl.when(i == 0)
    def _init():
        acc_ref[...] = jnp.zeros_like(acc_ref)

    # Pass 1: per-lane max across the K blocks (pure elementwise, no XLU).
    m = in_refs[0][...].astype(jnp.float32)
    for r in in_refs[1:]:
        m = jnp.maximum(m, r[...].astype(jnp.float32))

    # Pass 2: exp-sum and k-selection.  Re-read the (cheap) VMEM refs so only
    # a handful of f32 temporaries are live at once.
    kk = k_ref[0]
    ssum = jnp.zeros_like(m)
    s_k = jnp.zeros_like(m)
    for j, r in enumerate(in_refs):
        b = r[...].astype(jnp.float32)
        ssum = ssum + jnp.exp(b - m)
        s_k = s_k + (kk == j).astype(jnp.float32) * b

    val = (m - s_k) + jnp.log(ssum)      # logsumexp - s_k, per lane element

    lane = jax.lax.broadcasted_iota(jnp.int32, (tile_rows, 128), 1)
    if interleaved:
        # (N, 2) row-major -> flat; column 1 sits on odd lanes.
        base_mask = (lane & 1) == 1
    else:
        base_mask = None

    tile_idx = c * tiles_per_core + i    # un-clamped logical tile index

    @pl.when(tile_idx < num_tiles - 1)
    def _interior():                     # fast path: no range masking needed
        if base_mask is None:
            acc_ref[...] += val
        else:
            acc_ref[...] += jnp.where(base_mask, val, 0.0)

    @pl.when(tile_idx >= num_tiles - 1)
    def _tail():                         # last real tile or clamped redundant tile
        row = jax.lax.broadcasted_iota(jnp.int32, (tile_rows, 128), 0)
        flat = (tile_idx * tile_rows + row) * 128 + lane
        in_range = flat < n_valid_flat
        mask = in_range if base_mask is None else (base_mask & in_range)
        acc_ref[...] += jnp.where(mask, val, 0.0)

    @pl.when(i == tiles_per_core - 1)
    def _finalize():
        out_ref[0] = acc_ref[...]        # single write-back per core split


def instance_embedding_loss(K_scores, k, *, tile_rows=None, num_core_splits=None,
                            min_pallas_elems=_PALLAS_MIN_ELEMS):
    """K_scores: list of (N, C>=2) arrays; k: int / int32 scalar. Returns scalar loss."""
    K_scores = list(K_scores)
    Kn = len(K_scores)
    N, C = K_scores[0].shape

    # Common kernel input dtype: keep f32/bf16 as-is (bf16 halves HBM reads,
    # compute stays f32 in-kernel); anything else is upcast to f32.
    d0 = K_scores[0].dtype
    if all(s.dtype == d0 for s in K_scores) and d0 in (jnp.float32, jnp.bfloat16):
        in_dtype = d0
    else:
        in_dtype = jnp.float32
        K_scores = [s.astype(jnp.float32) for s in K_scores]

    interleaved = (C == 2)
    if interleaved:
        flats = [s.reshape(-1) for s in K_scores]          # (2N,), free reshape
        n_valid_flat = 2 * N
    else:
        # TODO(synk): column-1 gather for C != 2 stays an XLA copy in the wrapper.
        flats = [s[:, 1].reshape(-1) for s in K_scores]    # (N,)
        n_valid_flat = N

    M = pl.cdiv(n_valid_flat, 128)       # rows of the lane-dense (M, 128) view

    # Tiny problems: pallas_call launch + per-step overhead can't win.
    if Kn * N < min_pallas_elems or M < 8:
        scores = jnp.stack([s[:, 1] for s in K_scores], axis=0).astype(jnp.float32)
        logp = jax.nn.log_softmax(scores, axis=0)
        return -jnp.sum(jnp.take(logp, jnp.asarray(k, jnp.int32), axis=0))

    pad = M * 128 - n_valid_flat
    if pad:
        flats = [jnp.pad(f, (0, pad)) for f in flats]
    mats = [f.reshape(M, 128) for f in flats]

    # Tile rows: ~4 MiB of input DMA per grid step across the K inputs,
    # capped so double-buffered inputs + f32 temps stay VMEM-safe on v7x.
    itemsize = jnp.dtype(in_dtype).itemsize
    if tile_rows is None:
        tr = _TARGET_STEP_BYTES // max(1, Kn * 128 * itemsize)
        tr = max(8, min(tr, _MAX_TILE_ROWS))
    else:
        tr = int(tile_rows)
    tr = _round_down8(min(tr, _round_down8(M)))

    num_tiles = pl.cdiv(M, tr)
    nc = num_core_splits if num_core_splits is not None else _detect_num_tensorcores()
    nc = max(1, min(int(nc), 2))
    nc = min(nc, num_tiles)
    tiles_per_core = pl.cdiv(num_tiles, nc)

    k_arr = jnp.asarray(k, dtype=jnp.int32).reshape((1,))

    kernel = functools.partial(
        _iel_kernel, num_inputs=Kn, interleaved=interleaved,
        n_valid_flat=n_valid_flat, num_tiles=num_tiles,
        tiles_per_core=tiles_per_core, tile_rows=tr)

    def in_map(c, i, k_pref):
        # Clamp so redundant tail tiles re-read the last block (masked to 0).
        return (jnp.minimum(c * tiles_per_core + i, num_tiles - 1), 0)

    def out_map(c, i, k_pref):
        return (c, 0, 0)

    partials = pl.pallas_call(
        kernel,
        out_shape=jax.ShapeDtypeStruct((nc, tr, 128), jnp.float32),
        grid_spec=pltpu.PrefetchScalarGridSpec(
            num_scalar_prefetch=1,
            grid=(nc, tiles_per_core),
            in_specs=[pl.BlockSpec((tr, 128), in_map) for _ in range(Kn)],
            out_specs=pl.BlockSpec((1, tr, 128), out_map),
            scratch_shapes=[pltpu.VMEM((tr, 128), jnp.float32)],
        ),
        compiler_params=pltpu.CompilerParams(
            dimension_semantics=("parallel", "arbitrary")),
    )(k_arr, *mats)

    # Tiny final reduction of the per-core / per-lane partial sums.
    return jnp.sum(partials)


def _reference(K_scores, k):
    scores = jnp.stack([s[:, 1] for s in K_scores], axis=1).astype(jnp.float32)
    logp = jax.nn.log_softmax(scores, axis=1)
    return -jnp.sum(logp[:, k])


def _make_inputs(key, n, k_count, dtype, cols=2):
    keys = jax.random.split(key, k_count)
    return [jax.random.normal(keys[i], (n, cols), dtype=jnp.float32).astype(dtype)
            for i in range(k_count)]


if __name__ == "__main__":
    root_key = jax.random.PRNGKey(0)
    k1, k2, k3, k4, k5 = jax.random.split(root_key, 5)

    # 1) Pallas path: multi-tile accumulation (interior + tail), f32, C=2.
    K_scores = _make_inputs(k1, 16384, 8, jnp.float32)
    loss = jax.block_until_ready(
        instance_embedding_loss(K_scores, 3, tile_rows=32, num_core_splits=1))
    ref = jax.block_until_ready(_reference(K_scores, 3))
    assert jnp.allclose(loss, ref, rtol=1e-4, atol=1e-2), (loss, ref)

    # 2) Pallas path: ragged N (pad + partial tail block), 2-way core split with
    #    one clamped redundant tile, f32.
    K_scores = _make_inputs(k2, 10007, 8, jnp.float32)
    loss = jax.block_until_ready(
        instance_embedding_loss(K_scores, 5, tile_rows=56, num_core_splits=2))
    ref = jax.block_until_ready(_reference(K_scores, 5))
    assert jnp.allclose(loss, ref, rtol=1e-4, atol=1e-2), (loss, ref)

    # 3) Pallas path: bf16 inputs DMA'd as bf16, upcast in-kernel; default tiling.
    K_scores = _make_inputs(k3, 12288, 8, jnp.bfloat16)
    loss = jax.block_until_ready(instance_embedding_loss(K_scores, jnp.int32(1)))
    ref = jax.block_until_ready(_reference(K_scores, jnp.int32(1)))
    assert jnp.allclose(loss, ref, rtol=1e-3, atol=1e-1), (loss, ref)

    # 4) Pallas path: C=3 columns -> wrapper column gather, non-interleaved masks.
    K_scores = _make_inputs(k4, 16384, 6, jnp.float32, cols=3)
    loss = jax.block_until_ready(
        instance_embedding_loss(K_scores, 5, tile_rows=48))
    ref = jax.block_until_ready(_reference(K_scores, 5))
    assert jnp.allclose(loss, ref, rtol=1e-4, atol=1e-2), (loss, ref)

    # 5) Tiny problem: dispatcher takes the fused-XLA fallback path.
    K_scores = _make_inputs(k5, 64, 4, jnp.float32)
    loss = jax.block_until_ready(instance_embedding_loss(K_scores, 2))
    ref = jax.block_until_ready(_reference(K_scores, 2))
    assert jnp.allclose(loss, ref, rtol=1e-5, atol=1e-5), (loss, ref)

    print("KERNEL_OK")
</pallas_src>

<mosaic_0001>
module attributes {stable_mosaic.version = 11 : i64} {
  func.func @_iel_kernel(%arg0: i32, %arg1: i32, %arg2: memref<1xi32, #tpu.memory_space<smem>>, %arg3: memref<32x128xf32, #tpu.memory_space<vmem>>, %arg4: memref<32x128xf32, #tpu.memory_space<vmem>>, %arg5: memref<32x128xf32, #tpu.memory_space<vmem>>, %arg6: memref<32x128xf32, #tpu.memory_space<vmem>>, %arg7: memref<32x128xf32, #tpu.memory_space<vmem>>, %arg8: memref<32x128xf32, #tpu.memory_space<vmem>>, %arg9: memref<32x128xf32, #tpu.memory_space<vmem>>, %arg10: memref<32x128xf32, #tpu.memory_space<vmem>>, %arg11: memref<1x32x128xf32, #tpu.memory_space<vmem>>, %arg12: memref<32x128xf32, #tpu.memory_space<vmem>>) attributes {dimension_semantics = [#tpu.dimension_semantics<parallel>, #tpu.dimension_semantics<arbitrary>], iteration_bounds = array<i64: 1, 8>, scalar_prefetch = 1 : i64, scratch_operands = 1 : i64, tpu.core_type = #tpu.core_type<tc>, window_params = [{transform_indices = @transform_0, window_bounds = array<i64: 32, 128>}, {transform_indices = @transform_1, window_bounds = array<i64: 32, 128>}, {transform_indices = @transform_2, window_bounds = array<i64: 32, 128>}, {transform_indices = @transform_3, window_bounds = array<i64: 32, 128>}, {transform_indices = @transform_4, window_bounds = array<i64: 32, 128>}, {transform_indices = @transform_5, window_bounds = array<i64: 32, 128>}, {transform_indices = @transform_6, window_bounds = array<i64: 32, 128>}, {transform_indices = @transform_7, window_bounds = array<i64: 32, 128>}, {transform_indices = @transform_8, window_bounds = array<i64: 1, 32, 128>}]} {
    %c0_i32 = arith.constant 0 : i32
    %0 = arith.cmpi eq, %arg1, %c0_i32 : i32
    %1 = arith.extui %0 : i1 to i32
    %c0_i32_0 = arith.constant 0 : i32
    %2 = arith.cmpi ne, %1, %c0_i32_0 : i32
    scf.if %2 {
      %cst_43 = arith.constant 0.000000e+00 : f32
      %120 = vector.broadcast %cst_43 : f32 to vector<32x128xf32>
      %c0_44 = arith.constant 0 : index
      %c0_45 = arith.constant 0 : index
      %121 = vector.load %arg12[%c0_44, %c0_45] : memref<32x128xf32, #tpu.memory_space<vmem>>, vector<32x128xf32>
      tpu.vector_store %arg12[%c0_44, %c0_45], %120 {strides = array<i32>} : memref<32x128xf32, #tpu.memory_space<vmem>>, vector<32x128xf32>,
    } else {
    }
    %c0 = arith.constant 0 : index
    %c0_1 = arith.constant 0 : index
    %3 = vector.load %arg3[%c0, %c0_1] : memref<32x128xf32, #tpu.memory_space<vmem>>, vector<32x128xf32>
    %c0_2 = arith.constant 0 : index
    %c0_3 = arith.constant 0 : index
    %4 = vector.load %arg4[%c0_2, %c0_3] : memref<32x128xf32, #tpu.memory_space<vmem>>, vector<32x128xf32>
    %5 = arith.maximumf %3, %4 : vector<32x128xf32>
    %c0_4 = arith.constant 0 : index
    %c0_5 = arith.constant 0 : index
    %6 = vector.load %arg5[%c0_4, %c0_5] : memref<32x128xf32, #tpu.memory_space<vmem>>, vector<32x128xf32>
    %7 = arith.maximumf %5, %6 : vector<32x128xf32>
    %c0_6 = arith.constant 0 : index
    %c0_7 = arith.constant 0 : index
    %8 = vector.load %arg6[%c0_6, %c0_7] : memref<32x128xf32, #tpu.memory_space<vmem>>, vector<32x128xf32>
    %9 = arith.maximumf %7, %8 : vector<32x128xf32>
    %c0_8 = arith.constant 0 : index
    %c0_9 = arith.constant 0 : index
    %10 = vector.load %arg7[%c0_8, %c0_9] : memref<32x128xf32, #tpu.memory_space<vmem>>, vector<32x128xf32>
    %11 = arith.maximumf %9, %10 : vector<32x128xf32>
    %c0_10 = arith.constant 0 : index
    %c0_11 = arith.constant 0 : index
    %12 = vector.load %arg8[%c0_10, %c0_11] : memref<32x128xf32, #tpu.memory_space<vmem>>, vector<32x128xf32>
    %13 = arith.maximumf %11, %12 : vector<32x128xf32>
    %c0_12 = arith.constant 0 : index
    %c0_13 = arith.constant 0 : index
    %14 = vector.load %arg9[%c0_12, %c0_13] : memref<32x128xf32, #tpu.memory_space<vmem>>, vector<32x128xf32>
    %15 = arith.maximumf %13, %14 : vector<32x128xf32>
    %c0_14 = arith.constant 0 : index
    %c0_15 = arith.constant 0 : index
    %16 = vector.load %arg10[%c0_14, %c0_15] : memref<32x128xf32, #tpu.memory_space<vmem>>, vector<32x128xf32>
    %17 = arith.maximumf %15, %16 : vector<32x128xf32>
    %c0_16 = arith.constant 0 : index
    %18 = memref.load %arg2[%c0_16] : memref<1xi32, #tpu.memory_space<smem>>
    %cst = arith.constant 0.000000e+00 : f32
    %19 = vector.broadcast %cst : f32 to vector<32x128xf32>
    %cst_17 = arith.constant 0.000000e+00 : f32
    %20 = vector.broadcast %cst_17 : f32 to vector<32x128xf32>
    %c0_18 = arith.constant 0 : index
    %c0_19 = arith.constant 0 : index
    %21 = vector.load %arg3[%c0_18, %c0_19] : memref<32x128xf32, #tpu.memory_space<vmem>>, vector<32x128xf32>
    %22 = arith.subf %21, %17 : vector<32x128xf32>
    %23 = math.exp %22 : vector<32x128xf32>
    %24 = arith.addf %19, %23 : vector<32x128xf32>
    %c0_i32_20 = arith.constant 0 : i32
    %25 = arith.cmpi eq, %18, %c0_i32_20 : i32
    %26 = arith.extui %25 : i1 to i32
    %27 = arith.sitofp %26 : i32 to f32
    %28 = vector.broadcast %27 : f32 to vector<32x128xf32>
    %29 = arith.mulf %28, %21 : vector<32x128xf32>
    %30 = arith.addf %20, %29 : vector<32x128xf32>
    %c0_21 = arith.constant 0 : index
    %c0_22 = arith.constant 0 : index
    %31 = vector.load %arg4[%c0_21, %c0_22] : memref<32x128xf32, #tpu.memory_space<vmem>>, vector<32x128xf32>
    %32 = arith.subf %31, %17 : vector<32x128xf32>
    %33 = math.exp %32 : vector<32x128xf32>
    %34 = arith.addf %24, %33 : vector<32x128xf32>
    %c1_i32 = arith.constant 1 : i32
    %35 = arith.cmpi eq, %18, %c1_i32 : i32
    %36 = arith.extui %35 : i1 to i32
    %37 = arith.sitofp %36 : i32 to f32
    %38 = vector.broadcast %37 : f32 to vector<32x128xf32>
    %39 = arith.mulf %38, %31 : vector<32x128xf32>
    %40 = arith.addf %30, %39 : vector<32x128xf32>
    %c0_23 = arith.constant 0 : index
    %c0_24 = arith.constant 0 : index
    %41 = vector.load %arg5[%c0_23, %c0_24] : memref<32x128xf32, #tpu.memory_space<vmem>>, vector<32x128xf32>
    %42 = arith.subf %41, %17 : vector<32x128xf32>
    %43 = math.exp %42 : vector<32x128xf32>
    %44 = arith.addf %34, %43 : vector<32x128xf32>
    %c2_i32 = arith.constant 2 : i32
    %45 = arith.cmpi eq, %18, %c2_i32 : i32
    %46 = arith.extui %45 : i1 to i32
    %47 = arith.sitofp %46 : i32 to f32
    %48 = vector.broadcast %47 : f32 to vector<32x128xf32>
    %49 = arith.mulf %48, %41 : vector<32x128xf32>
    %50 = arith.addf %40, %49 : vector<32x128xf32>
    %c0_25 = arith.constant 0 : index
    %c0_26 = arith.constant 0 : index
    %51 = vector.load %arg6[%c0_25, %c0_26] : memref<32x128xf32, #tpu.memory_space<vmem>>, vector<32x128xf32>
    %52 = arith.subf %51, %17 : vector<32x128xf32>
    %53 = math.exp %52 : vector<32x128xf32>
    %54 = arith.addf %44, %53 : vector<32x128xf32>
    %c3_i32 = arith.constant 3 : i32
    %55 = arith.cmpi eq, %18, %c3_i32 : i32
    %56 = arith.extui %55 : i1 to i32
    %57 = arith.sitofp %56 : i32 to f32
    %58 = vector.broadcast %57 : f32 to vector<32x128xf32>
    %59 = arith.mulf %58, %51 : vector<32x128xf32>
    %60 = arith.addf %50, %59 : vector<32x128xf32>
    %c0_27 = arith.constant 0 : index
    %c0_28 = arith.constant 0 : index
    %61 = vector.load %arg7[%c0_27, %c0_28] : memref<32x128xf32, #tpu.memory_space<vmem>>, vector<32x128xf32>
    %62 = arith.subf %61, %17 : vector<32x128xf32>
    %63 = math.exp %62 : vector<32x128xf32>
    %64 = arith.addf %54, %63 : vector<32x128xf32>
    %c4_i32 = arith.constant 4 : i32
    %65 = arith.cmpi eq, %18, %c4_i32 : i32
    %66 = arith.extui %65 : i1 to i32
    %67 = arith.sitofp %66 : i32 to f32
    %68 = vector.broadcast %67 : f32 to vector<32x128xf32>
    %69 = arith.mulf %68, %61 : vector<32x128xf32>
    %70 = arith.addf %60, %69 : vector<32x128xf32>
    %c0_29 = arith.constant 0 : index
    %c0_30 = arith.constant 0 : index
    %71 = vector.load %arg8[%c0_29, %c0_30] : memref<32x128xf32, #tpu.memory_space<vmem>>, vector<32x128xf32>
    %72 = arith.subf %71, %17 : vector<32x128xf32>
    %73 = math.exp %72 : vector<32x128xf32>
    %74 = arith.addf %64, %73 : vector<32x128xf32>
    %c5_i32 = arith.constant 5 : i32
    %75 = arith.cmpi eq, %18, %c5_i32 : i32
    %76 = arith.extui %75 : i1 to i32
    %77 = arith.sitofp %76 : i32 to f32
    %78 = vector.broadcast %77 : f32 to vector<32x128xf32>
    %79 = arith.mulf %78, %71 : vector<32x128xf32>
    %80 = arith.addf %70, %79 : vector<32x128xf32>
    %c0_31 = arith.constant 0 : index
    %c0_32 = arith.constant 0 : index
    %81 = vector.load %arg9[%c0_31, %c0_32] : memref<32x128xf32, #tpu.memory_space<vmem>>, vector<32x128xf32>
    %82 = arith.subf %81, %17 : vector<32x128xf32>
    %83 = math.exp %82 : vector<32x128xf32>
    %84 = arith.addf %74, %83 : vector<32x128xf32>
    %c6_i32 = arith.constant 6 : i32
    %85 = arith.cmpi eq, %18, %c6_i32 : i32
    %86 = arith.extui %85 : i1 to i32
    %87 = arith.sitofp %86 : i32 to f32
    %88 = vector.broadcast %87 : f32 to vector<32x128xf32>
    %89 = arith.mulf %88, %81 : vector<32x128xf32>
    %90 = arith.addf %80, %89 : vector<32x128xf32>
    %c0_33 = arith.constant 0 : index
    %c0_34 = arith.constant 0 : index
    %91 = vector.load %arg10[%c0_33, %c0_34] : memref<32x128xf32, #tpu.memory_space<vmem>>, vector<32x128xf32>
    %92 = arith.subf %91, %17 : vector<32x128xf32>
    %93 = math.exp %92 : vector<32x128xf32>
    %94 = arith.addf %84, %93 : vector<32x128xf32>
    %c7_i32 = arith.constant 7 : i32
    %95 = arith.cmpi eq, %18, %c7_i32 : i32
    %96 = arith.extui %95 : i1 to i32
    %97 = arith.sitofp %96 : i32 to f32
    %98 = vector.broadcast %97 : f32 to vector<32x128xf32>
    %99 = arith.mulf %98, %91 : vector<32x128xf32>
    %100 = arith.addf %90, %99 : vector<32x128xf32>
    %101 = arith.subf %17, %100 : vector<32x128xf32>
    %102 = math.log %94 : vector<32x128xf32>
    %103 = arith.addf %101, %102 : vector<32x128xf32>
    %104 = tpu.iota {dimensions = array<i32: 1>} : vector<32x128xi32>
    %c1_i32_35 = arith.constant 1 : i32
    %105 = vector.broadcast %c1_i32_35 : i32 to vector<32x128xi32>
    %106 = arith.andi %104, %105 : vector<32x128xi32>
    %c1_i32_36 = arith.constant 1 : i32
    %107 = vector.broadcast %c1_i32_36 : i32 to vector<32x128xi32>
    %108 = arith.cmpi eq, %106, %107 : vector<32x128xi32>
    %c8_i32 = arith.constant 8 : i32
    %109 = arith.muli %arg0, %c8_i32 : i32
    %110 = arith.addi %109, %arg1 : i32
    %c7_i32_37 = arith.constant 7 : i32
    %111 = arith.cmpi slt, %110, %c7_i32_37 : i32
    %112 = arith.extui %111 : i1 to i32
    %c0_i32_38 = arith.constant 0 : i32
    %113 = arith.cmpi ne, %112, %c0_i32_38 : i32
    scf.if %113 {
      %c0_43 = arith.constant 0 : index
      %c0_44 = arith.constant 0 : index
      %120 = vector.load %arg12[%c0_43, %c0_44] : memref<32x128xf32, #tpu.memory_space<vmem>>, vector<32x128xf32>
      %cst_45 = arith.constant 0.000000e+00 : f32
      %121 = vector.broadcast %cst_45 : f32 to vector<32x128xf32>
      %122 = arith.select %108, %103, %121 : vector<32x128xi1>, vector<32x128xf32>
      %123 = arith.addf %120, %122 : vector<32x128xf32>
      %c0_46 = arith.constant 0 : index
      %c0_47 = arith.constant 0 : index
      %124 = vector.load %arg12[%c0_46, %c0_47] : memref<32x128xf32, #tpu.memory_space<vmem>>, vector<32x128xf32>
      tpu.vector_store %arg12[%c0_46, %c0_47], %123 {strides = array<i32>} : memref<32x128xf32, #tpu.memory_space<vmem>>, vector<32x128xf32>,
    } else {
    }
    %c7_i32_39 = arith.constant 7 : i32
    %114 = arith.cmpi sge, %110, %c7_i32_39 : i32
    %115 = arith.extui %114 : i1 to i32
    %c0_i32_40 = arith.constant 0 : i32
    %116 = arith.cmpi ne, %115, %c0_i32_40 : i32
    scf.if %116 {
      %120 = tpu.iota {dimensions = array<i32: 0>} : vector<32x128xi32>
      %c32_i32 = arith.constant 32 : i32
      %121 = arith.muli %110, %c32_i32 : i32
      %122 = vector.broadcast %121 : i32 to vector<32x128xi32>
      %123 = arith.addi %122, %120 : vector<32x128xi32>
      %c128_i32 = arith.constant 128 : i32
      %124 = vector.broadcast %c128_i32 : i32 to vector<32x128xi32>
      %125 = arith.muli %123, %124 : vector<32x128xi32>
      %126 = arith.addi %125, %104 : vector<32x128xi32>
      %c32768_i32 = arith.constant 32768 : i32
      %127 = vector.broadcast %c32768_i32 : i32 to vector<32x128xi32>
      %128 = arith.cmpi slt, %126, %127 : vector<32x128xi32>
      %129 = arith.andi %108, %128 : vector<32x128xi1>
      %c0_43 = arith.constant 0 : index
      %c0_44 = arith.constant 0 : index
      %130 = vector.load %arg12[%c0_43, %c0_44] : memref<32x128xf32, #tpu.memory_space<vmem>>, vector<32x128xf32>
      %cst_45 = arith.constant 0.000000e+00 : f32
      %131 = vector.broadcast %cst_45 : f32 to vector<32x128xf32>
      %132 = arith.select %129, %103, %131 : vector<32x128xi1>, vector<32x128xf32>
      %133 = arith.addf %130, %132 : vector<32x128xf32>
      %c0_46 = arith.constant 0 : index
      %c0_47 = arith.constant 0 : index
      %134 = vector.load %arg12[%c0_46, %c0_47] : memref<32x128xf32, #tpu.memory_space<vmem>>, vector<32x128xf32>
      tpu.vector_store %arg12[%c0_46, %c0_47], %133 {strides = array<i32>} : memref<32x128xf32, #tpu.memory_space<vmem>>, vector<32x128xf32>,
    } else {
    }
    %c7_i32_41 = arith.constant 7 : i32
    %117 = arith.cmpi eq, %arg1, %c7_i32_41 : i32
    %118 = arith.extui %117 : i1 to i32
    %c0_i32_42 = arith.constant 0 : i32
    %119 = arith.cmpi ne, %118, %c0_i32_42 : i32
    scf.if %119 {
      %c0_43 = arith.constant 0 : index
      %c0_44 = arith.constant 0 : index
      %120 = vector.load %arg12[%c0_43, %c0_44] : memref<32x128xf32, #tpu.memory_space<vmem>>, vector<32x128xf32>
      %c0_45 = arith.constant 0 : index
      %c0_46 = arith.constant 0 : index
      %c0_47 = arith.constant 0 : index
      %121 = vector.load %arg11[%c0_45, %c0_46, %c0_47] : memref<1x32x128xf32, #tpu.memory_space<vmem>>, vector<1x32x128xf32>
      %122 = vector.shape_cast %121 : vector<1x32x128xf32> to vector<32x128xf32>
      %123 = vector.shape_cast %120 : vector<32x128xf32> to vector<1x32x128xf32>
      tpu.vector_store %arg11[%c0_45, %c0_46, %c0_47], %123 {strides = array<i32>} : memref<1x32x128xf32, #tpu.memory_space<vmem>>, vector<1x32x128xf32>,
    } else {
    }
    return
  }
  func.func @transform_0(%arg0: i32, %arg1: i32, %arg2: memref<1xi32, #tpu.memory_space<smem>>) -> (i32, i32) {
    %c8_i32 = arith.constant 8 : i32
    %0 = arith.muli %arg0, %c8_i32 : i32
    %1 = arith.addi %0, %arg1 : i32
    %c7_i32 = arith.constant 7 : i32
    %2 = arith.minsi %1, %c7_i32 : i32
    %c0_i32 = arith.constant 0 : i32
    %c0_i32_0 = arith.constant 0 : i32
    return %2, %c0_i32 : i32, i32
  }
  func.func @transform_1(%arg0: i32, %arg1: i32, %arg2: memref<1xi32, #tpu.memory_space<smem>>) -> (i32, i32) {
    %c8_i32 = arith.constant 8 : i32
    %0 = arith.muli %arg0, %c8_i32 : i32
    %1 = arith.addi %0, %arg1 : i32
    %c7_i32 = arith.constant 7 : i32
    %2 = arith.minsi %1, %c7_i32 : i32
    %c0_i32 = arith.constant 0 : i32
    %c0_i32_0 = arith.constant 0 : i32
    return %2, %c0_i32 : i32, i32
  }
  func.func @transform_2(%arg0: i32, %arg1: i32, %arg2: memref<1xi32, #tpu.memory_space<smem>>) -> (i32, i32) {
    %c8_i32 = arith.constant 8 : i32
    %0 = arith.muli %arg0, %c8_i32 : i32
    %1 = arith.addi %0, %arg1 : i32
    %c7_i32 = arith.constant 7 : i32
    %2 = arith.minsi %1, %c7_i32 : i32
    %c0_i32 = arith.constant 0 : i32
    %c0_i32_0 = arith.constant 0 : i32
    return %2, %c0_i32 : i32, i32
  }
  func.func @transform_3(%arg0: i32, %arg1: i32, %arg2: memref<1xi32, #tpu.memory_space<smem>>) -> (i32, i32) {
    %c8_i32 = arith.constant 8 : i32
    %0 = arith.muli %arg0, %c8_i32 : i32
    %1 = arith.addi %0, %arg1 : i32
    %c7_i32 = arith.constant 7 : i32
    %2 = arith.minsi %1, %c7_i32 : i32
    %c0_i32 = arith.constant 0 : i32
    %c0_i32_0 = arith.constant 0 : i32
    return %2, %c0_i32 : i32, i32
  }
  func.func @transform_4(%arg0: i32, %arg1: i32, %arg2: memref<1xi32, #tpu.memory_space<smem>>) -> (i32, i32) {
    %c8_i32 = arith.constant 8 : i32
    %0 = arith.muli %arg0, %c8_i32 : i32
    %1 = arith.addi %0, %arg1 : i32
    %c7_i32 = arith.constant 7 : i32
    %2 = arith.minsi %1, %c7_i32 : i32
    %c0_i32 = arith.constant 0 : i32
    %c0_i32_0 = arith.constant 0 : i32
    return %2, %c0_i32 : i32, i32
  }
  func.func @transform_5(%arg0: i32, %arg1: i32, %arg2: memref<1xi32, #tpu.memory_space<smem>>) -> (i32, i32) {
    %c8_i32 = arith.constant 8 : i32
    %0 = arith.muli %arg0, %c8_i32 : i32
    %1 = arith.addi %0, %arg1 : i32
    %c7_i32 = arith.constant 7 : i32
    %2 = arith.minsi %1, %c7_i32 : i32
    %c0_i32 = arith.constant 0 : i32
    %c0_i32_0 = arith.constant 0 : i32
    return %2, %c0_i32 : i32, i32
  }
  func.func @transform_6(%arg0: i32, %arg1: i32, %arg2: memref<1xi32, #tpu.memory_space<smem>>) -> (i32, i32) {
    %c8_i32 = arith.constant 8 : i32
    %0 = arith.muli %arg0, %c8_i32 : i32
    %1 = arith.addi %0, %arg1 : i32
    %c7_i32 = arith.constant 7 : i32
    %2 = arith.minsi %1, %c7_i32 : i32
    %c0_i32 = arith.constant 0 : i32
    %c0_i32_0 = arith.constant 0 : i32
    return %2, %c0_i32 : i32, i32
  }
  func.func @transform_7(%arg0: i32, %arg1: i32, %arg2: memref<1xi32, #tpu.memory_space<smem>>) -> (i32, i32) {
    %c8_i32 = arith.constant 8 : i32
    %0 = arith.muli %arg0, %c8_i32 : i32
    %1 = arith.addi %0, %arg1 : i32
    %c7_i32 = arith.constant 7 : i32
    %2 = arith.minsi %1, %c7_i32 : i32
    %c0_i32 = arith.constant 0 : i32
    %c0_i32_0 = arith.constant 0 : i32
    return %2, %c0_i32 : i32, i32
  }
  func.func @transform_8(%arg0: i32, %arg1: i32, %arg2: memref<1xi32, #tpu.memory_space<smem>>) -> (i32, i32, i32) {
    %c0_i32 = arith.constant 0 : i32
    %c0_i32_0 = arith.constant 0 : i32
    %c0_i32_1 = arith.constant 0 : i32
    return %arg0, %c0_i32, %c0_i32_0 : i32, i32, i32
  }
}

</mosaic_0001>

<llo_original>
// kernel: tpu_custom_call.1
$region0: #{tpu_custom_call.1}
  #allocation0 [shape = 'u32[]', space=smem, size = 0x4, offset = 0x4, fixed_abs, tag = 'smem constant byte address 0x4 - core index']
  #allocation1 [shape = 'u32[72,128]{1,0:T(1,128)}', space=vmem, size = 0x9000, scoped, tag = 'internal scratch']
  #allocation2 [shape = 'f32[32,128]{1,0:T(8,128)}', space=vmem, size = 0x4000, scoped, tag = 'scratch operand']
  #allocation3 [shape = 's32[1]{0}', space=sflag, size = 0x4, scoped, tag = 'scoped memory for tpu_custom_call.1']
  #allocation4 [shape = 's32[1]{0:T(128)S(6)}', space=smem, size = 0x200, scoped, tag = 'prefetched SMEM operand 0']
  %s0 = inlined_call_operand.<no memory space> [shape: s32[1], index: 0, kind: input, shape index: {}]
  %s1 = inlined_call_operand.hbm [shape: f32[256,128], index: 1, kind: input, shape index: {}]
  %s2 = inlined_call_operand.hbm [shape: f32[256,128], index: 2, kind: input, shape index: {}]
  %s3 = inlined_call_operand.hbm [shape: f32[256,128], index: 3, kind: input, shape index: {}]
  %s4 = inlined_call_operand.hbm [shape: f32[256,128], index: 4, kind: input, shape index: {}]
  %s5 = inlined_call_operand.hbm [shape: f32[256,128], index: 5, kind: input, shape index: {}]
  %s6 = inlined_call_operand.hbm [shape: f32[256,128], index: 6, kind: input, shape index: {}]
  %s7 = inlined_call_operand.hbm [shape: f32[256,128], index: 7, kind: input, shape index: {}]
  %s8 = inlined_call_operand.hbm [shape: f32[256,128], index: 8, kind: input, shape index: {}]
  %s9 = inlined_call_operand.hbm [shape: f32[1,32,128], index: 9, kind: output, shape index: {}]
  %s10 = sld [smem:[#allocation0]]
  $region113: #{tpu_custom_call.1} parent=0
    _
  %s12 = ssub.s32 1, %s10
  %s13 = scalar_select 0, %s12, %s10
  %14 = sst [smem:[#allocation4]] %s0
  $region1: #{tpu_custom_call.1} parent=0
    #allocation5 [shape = 'u8[32768]{0}', space=vmem, size = 0x8000, scoped, tag = 'input window, operand 1']
    #allocation6 [shape = 's32[2]{0}', space=sflag, size = 0x8, scoped, tag = 'scoped memory for tpu_custom_call.1']
    #allocation7 [shape = 's32[2]{0}', space=sflag, size = 0x8, scoped, tag = 'scoped memory for tpu_custom_call.1']
    #allocation8 [shape = 'u8[32768]{0}', space=vmem, size = 0x8000, scoped, tag = 'input window, operand 2']
    #allocation9 [shape = 's32[2]{0}', space=sflag, size = 0x8, scoped, tag = 'scoped memory for tpu_custom_call.1']
    #allocation10 [shape = 'u8[32768]{0}', space=vmem, size = 0x8000, scoped, tag = 'input window, operand 3']
    #allocation11 [shape = 'u8[32768]{0}', space=vmem, size = 0x8000, scoped, tag = 'input window, operand 4']
    #allocation12 [shape = 's32[2]{0}', space=sflag, size = 0x8, scoped, tag = 'scoped memory for tpu_custom_call.1']
    #allocation13 [shape = 'u8[32768]{0}', space=vmem, size = 0x8000, scoped, tag = 'input window, operand 5']
    #allocation14 [shape = 'u8[32768]{0}', space=vmem, size = 0x8000, scoped, tag = 'input window, operand 6']
    #allocation15 [shape = 's32[2]{0}', space=sflag, size = 0x8, scoped, tag = 'scoped memory for tpu_custom_call.1']
    #allocation16 [shape = 'u8[32768]{0}', space=vmem, size = 0x8000, scoped, tag = 'input window, operand 7']
    #allocation17 [shape = 'u8[32768]{0}', space=vmem, size = 0x8000, scoped, tag = 'input window, operand 8']
    #allocation18 [shape = 's32[2]{0}', space=sflag, size = 0x8, scoped, tag = 'scoped memory for tpu_custom_call.1']
    #allocation19 [shape = 'u8[16384]{0}', space=vmem, size = 0x4000, scoped, tag = 'output window, operand 0, single buffered']
    %15 = vsyncpa [#allocation6], 0
    %s16 = scalar_lea.sflag [#allocation6], 1
    %17 = vsyncpa %s16, 0
    %18 = vsyncpa [#allocation9], 0
    %s19 = scalar_lea.sflag [#allocation9], 1
    %20 = vsyncpa %s19, 0
    %21 = vsyncpa [#allocation12], 0
    %s22 = scalar_lea.sflag [#allocation12], 1
    %23 = vsyncpa %s22, 0
    %24 = vsyncpa [#allocation15], 0
    %s25 = scalar_lea.sflag [#allocation15], 1
    %26 = vsyncpa %s25, 0
    %27 = vsyncpa [#allocation18], 0
    %s28 = scalar_lea.sflag [#allocation18], 1
    %29 = vsyncpa %s28, 0
    %30 = vsyncpa [#allocation7], 0
    loop: start=0, step=1, limit=10
    $region2: #{tpu_custom_call.1} parent=1 // loop_pre_header
      _
    $region3: #{tpu_custom_call.1} parent=1 // loop_header
      %s32 = sphi 0, %s36
      %p33 = scmp.ge.s32.totalorder %s32, 10
      %s39 = sphi 0, %s51
      %s40 = sphi 0, %s47
      %s41 = sphi 0, %s39
      %s42 = sphi 0, %s40
      %s43 = sphi 0, %s41
      %s44 = sphi 0, %s42
      %s62 = sphi 0, %s64
      %s65 = sphi 0, %s62
      %s66 = sphi 0, %s65
      %s82 = sphi 0, %s66
      %s96 = sphi 0, %s98
      %s99 = sphi 0, %s96
      %s100 = sphi 0, %s99
      %s116 = sphi 0, %s100
      %s130 = sphi 0, %s132
      %s133 = sphi 0, %s130
      %s134 = sphi 0, %s133
      %s150 = sphi 0, %s134
      %s164 = sphi 0, %s166
      %s167 = sphi 0, %s164
      %s168 = sphi 0, %s167
      %s184 = sphi 0, %s168
      %s198 = sphi 0, %s200
      %s201 = sphi 0, %s198
      %s202 = sphi 0, %s201
      %s218 = sphi 0, %s202
      %s232 = sphi 0, %s234
      %s235 = sphi 0, %s232
      %s236 = sphi 0, %s235
      %s252 = sphi 0, %s236
      %s266 = sphi 0, %s268
      %s269 = sphi 0, %s266
      %s270 = sphi 0, %s269
      %s286 = sphi 0, %s270
      %s300 = sphi 0, %s302
      %s303 = sphi 0, %s300
      %s304 = sphi 0, %s303
      %s320 = sphi 0, %s304
      %s326 = sphi 0, %s328
      %s329 = sphi 0, %s326
      %s330 = sphi 0, %s329
      %s346 = sphi 0, %s330
    $region4: #{tpu_custom_call.1} parent=1 // loop_header_branch
      %35 = sbr.rel (%p33) target = $region8
    $region5: #{tpu_custom_call.1} parent=1 // loop_body
      %s37 = ssub.s32 %s32, 1
      %s38 = ssub.s32 %s32, 2
      %s45 = sadd.s32 1, %s40
      %p46 = scmp.ge.s32.totalorder %s45, 8
      %s47 = scalar_select %p46, 0, %s45
      %s48 = sadd.s32 1, %s39
      %s49 = scalar_select %p46, %s48, %s39
      %p50 = scmp.ge.s32.totalorder %s49, 1
      %s51 = scalar_select %p50, 0, %s49
      %s52 = smul.u32 %s39, 8
      %s53 = sadd.s32 %s52, %s40
      %p54 = scmp.lt.s32.totalorder %s53, 7
      %s55 = scalar_select %p54, %s53, 7
      %s56 = smul.u32 %s51, 8
      %s57 = sadd.s32 %s56, %s47
      %p58 = scmp.lt.s32.totalorder %s57, 7
      %s59 = scalar_select %p58, %s57, 7
      %s60 = ssub.s32 %s55, %s59
      %p61 = scmp.eq.s32.totalorder %s60, 0
      %s63 = sadd.s32 %s62, 1
      %s64 = scalar_select %p61, %s62, %s63
      %p67 = pneg %p61
      %p68 = scmp.eq.s32.totalorder %s32, 7
      %p69 = por %p67, %p68
      %p70 = scmp.ne.s32.totalorder %s62, %s65
      %p71 = scmp.eq.s32.totalorder %s32, 0
      %p72 = por %p70, %p71
      %p73 = scmp.ne.s32.totalorder %s62, %s65
      %p74 = scmp.eq.s32.totalorder %s37, 7
      %p75 = por %p73, %p74
      %p76 = scmp.ne.s32.totalorder %s65, %s66
      %p77 = scmp.eq.s32.totalorder %s37, 0
      %p78 = por %p76, %p77
      %p79 = scmp.ne.s32.totalorder %s65, %s66
      %p80 = scmp.eq.s32.totalorder %s38, 7
      %p81 = por %p79, %p80
      %p83 = scmp.ne.s32.totalorder %s66, %s82
      %p84 = scmp.eq.s32.totalorder %s38, 0
      %p85 = por %p83, %p84
      %s86 = smul.u32 %s39, 8
      %s87 = sadd.s32 %s86, %s40
      %p88 = scmp.lt.s32.totalorder %s87, 7
      %s89 = scalar_select %p88, %s87, 7
      %s90 = smul.u32 %s51, 8
      %s91 = sadd.s32 %s90, %s47
      %p92 = scmp.lt.s32.totalorder %s91, 7
      %s93 = scalar_select %p92, %s91, 7
      %s94 = ssub.s32 %s89, %s93
      %p95 = scmp.eq.s32.totalorder %s94, 0
      %s97 = sadd.s32 %s96, 1
      %s98 = scalar_select %p95, %s96, %s97
      %p101 = pneg %p95
      %p102 = scmp.eq.s32.totalorder %s32, 7
      %p103 = por %p101, %p102
      %p104 = scmp.ne.s32.totalorder %s96, %s99
      %p105 = scmp.eq.s32.totalorder %s32, 0
      %p106 = por %p104, %p105
      %p107 = scmp.ne.s32.totalorder %s96, %s99
      %p108 = scmp.eq.s32.totalorder %s37, 7
      %p109 = por %p107, %p108
      %p110 = scmp.ne.s32.totalorder %s99, %s100
      %p111 = scmp.eq.s32.totalorder %s37, 0
      %p112 = por %p110, %p111
      %p113 = scmp.ne.s32.totalorder %s99, %s100
      %p114 = scmp.eq.s32.totalorder %s38, 7
      %p115 = por %p113, %p114
      %p117 = scmp.ne.s32.totalorder %s100, %s116
      %p118 = scmp.eq.s32.totalorder %s38, 0
      %p119 = por %p117, %p118
      %s120 = smul.u32 %s39, 8
      %s121 = sadd.s32 %s120, %s40
      %p122 = scmp.lt.s32.totalorder %s121, 7
      %s123 = scalar_select %p122, %s121, 7
      %s124 = smul.u32 %s51, 8
      %s125 = sadd.s32 %s124, %s47
      %p126 = scmp.lt.s32.totalorder %s125, 7
      %s127 = scalar_select %p126, %s125, 7
      %s128 = ssub.s32 %s123, %s127
      %p129 = scmp.eq.s32.totalorder %s128, 0
      %s131 = sadd.s32 %s130, 1
      %s132 = scalar_select %p129, %s130, %s131
      %p135 = pneg %p129
      %p136 = scmp.eq.s32.totalorder %s32, 7
      %p137 = por %p135, %p136
      %p138 = scmp.ne.s32.totalorder %s130, %s133
      %p139 = scmp.eq.s32.totalorder %s32, 0
      %p140 = por %p138, %p139
      %p141 = scmp.ne.s32.totalorder %s130, %s133
      %p142 = scmp.eq.s32.totalorder %s37, 7
      %p143 = por %p141, %p142
      %p144 = scmp.ne.s32.totalorder %s133, %s134
      %p145 = scmp.eq.s32.totalorder %s37, 0
      %p146 = por %p144, %p145
      %p147 = scmp.ne.s32.totalorder %s133, %s134
      %p148 = scmp.eq.s32.totalorder %s38, 7
      %p149 = por %p147, %p148
      %p151 = scmp.ne.s32.totalorder %s134, %s150
      %p152 = scmp.eq.s32.totalorder %s38, 0
      %p153 = por %p151, %p152
      %s154 = smul.u32 %s39, 8
      %s155 = sadd.s32 %s154, %s40
      %p156 = scmp.lt.s32.totalorder %s155, 7
      %s157 = scalar_select %p156, %s155, 7
      %s158 = smul.u32 %s51, 8
      %s159 = sadd.s32 %s158, %s47
      %p160 = scmp.lt.s32.totalorder %s159, 7
      %s161 = scalar_select %p160, %s159, 7
      %s162 = ssub.s32 %s157, %s161
      %p163 = scmp.eq.s32.totalorder %s162, 0
      %s165 = sadd.s32 %s164, 1
      %s166 = scalar_select %p163, %s164, %s165
      %p169 = pneg %p163
      %p170 = scmp.eq.s32.totalorder %s32, 7
      %p171 = por %p169, %p170
      %p172 = scmp.ne.s32.totalorder %s164, %s167
      %p173 = scmp.eq.s32.totalorder %s32, 0
      %p174 = por %p172, %p173
      %p175 = scmp.ne.s32.totalorder %s164, %s167
      %p176 = scmp.eq.s32.totalorder %s37, 7
      %p177 = por %p175, %p176
      %p178 = scmp.ne.s32.totalorder %s167, %s168
      %p179 = scmp.eq.s32.totalorder %s37, 0
      %p180 = por %p178, %p179
      %p181 = scmp.ne.s32.totalorder %s167, %s168
      %p182 = scmp.eq.s32.totalorder %s38, 7
      %p183 = por %p181, %p182
      %p185 = scmp.ne.s32.totalorder %s168, %s184
      %p186 = scmp.eq.s32.totalorder %s38, 0
      %p187 = por %p185, %p186
      %s188 = smul.u32 %s39, 8
      %s189 = sadd.s32 %s188, %s40
      %p190 = scmp.lt.s32.totalorder %s189, 7
      %s191 = scalar_select %p190, %s189, 7
      %s192 = smul.u32 %s51, 8
      %s193 = sadd.s32 %s192, %s47
      %p194 = scmp.lt.s32.totalorder %s193, 7
      %s195 = scalar_select %p194, %s193, 7
      %s196 = ssub.s32 %s191, %s195
      %p197 = scmp.eq.s32.totalorder %s196, 0
      %s199 = sadd.s32 %s198, 1
      %s200 = scalar_select %p197, %s198, %s199
      %p203 = pneg %p197
      %p204 = scmp.eq.s32.totalorder %s32, 7
      %p205 = por %p203, %p204
      %p206 = scmp.ne.s32.totalorder %s198, %s201
      %p207 = scmp.eq.s32.totalorder %s32, 0
      %p208 = por %p206, %p207
      %p209 = scmp.ne.s32.totalorder %s198, %s201
      %p210 = scmp.eq.s32.totalorder %s37, 7
      %p211 = por %p209, %p210
      %p212 = scmp.ne.s32.totalorder %s201, %s202
      %p213 = scmp.eq.s32.totalorder %s37, 0
      %p214 = por %p212, %p213
      %p215 = scmp.ne.s32.totalorder %s201, %s202
      %p216 = scmp.eq.s32.totalorder %s38, 7
      %p217 = por %p215, %p216
      %p219 = scmp.ne.s32.totalorder %s202, %s218
      %p220 = scmp.eq.s32.totalorder %s38, 0
      %p221 = por %p219, %p220
      %s222 = smul.u32 %s39, 8
      %s223 = sadd.s32 %s222, %s40
      %p224 = scmp.lt.s32.totalorder %s223, 7
      %s225 = scalar_select %p224, %s223, 7
      %s226 = smul.u32 %s51, 8
      %s227 = sadd.s32 %s226, %s47
      %p228 = scmp.lt.s32.totalorder %s227, 7
      %s229 = scalar_select %p228, %s227, 7
      %s230 = ssub.s32 %s225, %s229
      %p231 = scmp.eq.s32.totalorder %s230, 0
      %s233 = sadd.s32 %s232, 1
      %s234 = scalar_select %p231, %s232, %s233
      %p237 = pneg %p231
      %p238 = scmp.eq.s32.totalorder %s32, 7
      %p239 = por %p237, %p238
      %p240 = scmp.ne.s32.totalorder %s232, %s235
      %p241 = scmp.eq.s32.totalorder %s32, 0
      %p242 = por %p240, %p241
      %p243 = scmp.ne.s32.totalorder %s232, %s235
      %p244 = scmp.eq.s32.totalorder %s37, 7
      %p245 = por %p243, %p244
      %p246 = scmp.ne.s32.totalorder %s235, %s236
      %p247 = scmp.eq.s32.totalorder %s37, 0
      %p248 = por %p246, %p247
      %p249 = scmp.ne.s32.totalorder %s235, %s236
      %p250 = scmp.eq.s32.totalorder %s38, 7
      %p251 = por %p249, %p250
      %p253 = scmp.ne.s32.totalorder %s236, %s252
      %p254 = scmp.eq.s32.totalorder %s38, 0
      %p255 = por %p253, %p254
      %s256 = smul.u32 %s39, 8
      %s257 = sadd.s32 %s256, %s40
      %p258 = scmp.lt.s32.totalorder %s257, 7
      %s259 = scalar_select %p258, %s257, 7
      %s260 = smul.u32 %s51, 8
      %s261 = sadd.s32 %s260, %s47
      %p262 = scmp.lt.s32.totalorder %s261, 7
      %s263 = scalar_select %p262, %s261, 7
      %s264 = ssub.s32 %s259, %s263
      %p265 = scmp.eq.s32.totalorder %s264, 0
      %s267 = sadd.s32 %s266, 1
      %s268 = scalar_select %p265, %s266, %s267
      %p271 = pneg %p265
      %p272 = scmp.eq.s32.totalorder %s32, 7
      %p273 = por %p271, %p272
      %p274 = scmp.ne.s32.totalorder %s266, %s269
      %p275 = scmp.eq.s32.totalorder %s32, 0
      %p276 = por %p274, %p275
      %p277 = scmp.ne.s32.totalorder %s266, %s269
      %p278 = scmp.eq.s32.totalorder %s37, 7
      %p279 = por %p277, %p278
      %p280 = scmp.ne.s32.totalorder %s269, %s270
      %p281 = scmp.eq.s32.totalorder %s37, 0
      %p282 = por %p280, %p281
      %p283 = scmp.ne.s32.totalorder %s269, %s270
      %p284 = scmp.eq.s32.totalorder %s38, 7
      %p285 = por %p283, %p284
      %p287 = scmp.ne.s32.totalorder %s270, %s286
      %p288 = scmp.eq.s32.totalorder %s38, 0
      %p289 = por %p287, %p288
      %s290 = smul.u32 %s39, 8
      %s291 = sadd.s32 %s290, %s40
      %p292 = scmp.lt.s32.totalorder %s291, 7
      %s293 = scalar_select %p292, %s291, 7
      %s294 = smul.u32 %s51, 8
      %s295 = sadd.s32 %s294, %s47
      %p296 = scmp.lt.s32.totalorder %s295, 7
      %s297 = scalar_select %p296, %s295, 7
      %s298 = ssub.s32 %s293, %s297
      %p299 = scmp.eq.s32.totalorder %s298, 0
      %s301 = sadd.s32 %s300, 1
      %s302 = scalar_select %p299, %s300, %s301
      %p305 = pneg %p299
      %p306 = scmp.eq.s32.totalorder %s32, 7
      %p307 = por %p305, %p306
      %p308 = scmp.ne.s32.totalorder %s300, %s303
      %p309 = scmp.eq.s32.totalorder %s32, 0
      %p310 = por %p308, %p309
      %p311 = scmp.ne.s32.totalorder %s300, %s303
      %p312 = scmp.eq.s32.totalorder %s37, 7
      %p313 = por %p311, %p312
      %p314 = scmp.ne.s32.totalorder %s303, %s304
      %p315 = scmp.eq.s32.totalorder %s37, 0
      %p316 = por %p314, %p315
      %p317 = scmp.ne.s32.totalorder %s303, %s304
      %p318 = scmp.eq.s32.totalorder %s38, 7
      %p319 = por %p317, %p318
      %p321 = scmp.ne.s32.totalorder %s304, %s320
      %p322 = scmp.eq.s32.totalorder %s38, 0
      %p323 = por %p321, %p322
      %s324 = ssub.s32 %s39, %s51
      %p325 = scmp.eq.s32.totalorder %s324, 0
      %s327 = sadd.s32 %s326, 1
      %s328 = scalar_select %p325, %s326, %s327
      %p331 = pneg %p325
      %p332 = scmp.eq.s32.totalorder %s32, 7
      %p333 = por %p331, %p332
      %p334 = scmp.ne.s32.totalorder %s326, %s329
      %p335 = scmp.eq.s32.totalorder %s32, 0
      %p336 = por %p334, %p335
      %p337 = scmp.ne.s32.totalorder %s326, %s329
      %p338 = scmp.eq.s32.totalorder %s37, 7
      %p339 = por %p337, %p338
      %p340 = scmp.ne.s32.totalorder %s329, %s330
      %p341 = scmp.eq.s32.totalorder %s37, 0
      %p342 = por %p340, %p341
      %p343 = scmp.ne.s32.totalorder %s329, %s330
      %p344 = scmp.eq.s32.totalorder %s38, 7
      %p345 = por %p343, %p344
      %p347 = scmp.ne.s32.totalorder %s330, %s346
      %p348 = scmp.eq.s32.totalorder %s38, 0
      %p349 = por %p347, %p348
      %p350 = scmp.le.s32.totalorder 1, %s32
      %p351 = scmp.lt.s32.totalorder %s32, 9
      %p352 = pnand %p350, %p351
      %p353 = pneg %p352
      // Predicated region
      $region9: #{tpu_custom_call.1} parent=5 // pred_check
        _
      $region10: #{tpu_custom_call.1} parent=5 // pred_check_branch
        %355 = sbr.rel (%p352) target = $region12
      $region11: #{tpu_custom_call.1} parent=5 // pred_region
        %s356 = ssub.s32 %s32, 1
      $region12: #{tpu_custom_call.1} parent=5 // pred_fallthru
        _
      %p357 = scmp.lt.s32.totalorder %s32, 8
      // Predicated region
      $region13: #{tpu_custom_call.1} parent=5 // pred_check
        %p358 = pneg %p357
      $region14: #{tpu_custom_call.1} parent=5 // pred_check_branch
        %360 = sbr.rel (%p358) target = $region16
      $region15: #{tpu_custom_call.1} parent=5 // pred_region
        // Predicated region
        $region17: #{tpu_custom_call.1} parent=15 // pred_check
          %p361 = pneg %p72
        $region18: #{tpu_custom_call.1} parent=15 // pred_check_branch
          %363 = sbr.rel (%p361) target = $region20
        $region19: #{tpu_custom_call.1} parent=15 // pred_region
          %s364 = sand.u32 %s62, 1
          %s365 = scalar_lea.sflag [#allocation6], %s364
          %s366 = sand.u32 %s62, 1
          %s367 = smul.addr %s366, 32
          %s368 = scalar_lea.vmem [#allocation5], %s367
          %s369 = smul.u32 %s39, 8
          %s370 = sadd.s32 %s369, %s40
          %p371 = scmp.lt.s32.totalorder %s370, 7
          %s372 = scalar_select %p371, %s370, 7
          %s373 = smul.u32 4, %s372
          %375 = vsyncadd %s365, 0
          %s376 = smul.addr %s373, 8
          %s377 = scalar_lea.hbm %s1, %s376
          %s378 = sshll.u32 %s377, 4
          %s379 = int_to_ptr.hbm [resolvable:$true] %s378
          %s380 = sshll.u32 %s368, 4
          %s381 = int_to_ptr.vmem [resolvable:$true] %s380
          %386 = dma.hbm_to_vmem [thread:$0]  %s379, 512, %s381, %s365, 128, 128, 8
        $region20: #{tpu_custom_call.1} parent=15 // pred_fallthru
          _
        // Predicated region
        $region21: #{tpu_custom_call.1} parent=15 // pred_check
          %p387 = pneg %p106
        $region22: #{tpu_custom_call.1} parent=15 // pred_check_branch
          %389 = sbr.rel (%p387) target = $region24
        $region23: #{tpu_custom_call.1} parent=15 // pred_region
          %s390 = sand.u32 %s32, 1
          %s391 = scalar_lea.sflag [#allocation9], %s390
          %s392 = sand.u32 %s96, 1
          %s393 = smul.addr %s392, 32
          %s394 = scalar_lea.vmem [#allocation8], %s393
          %s395 = smul.u32 %s39, 8
          %s396 = sadd.s32 %s395, %s40
          %p397 = scmp.lt.s32.totalorder %s396, 7
          %s398 = scalar_select %p397, %s396, 7
          %s399 = smul.u32 4, %s398
          %401 = vsyncadd %s391, 0
          %s402 = smul.addr %s399, 8
          %s403 = scalar_lea.hbm %s2, %s402
          %s404 = sshll.u32 %s403, 4
          %s405 = int_to_ptr.hbm [resolvable:$true] %s404
          %s406 = sshll.u32 %s394, 4
          %s407 = int_to_ptr.vmem [resolvable:$true] %s406
          %412 = dma.hbm_to_vmem [thread:$0]  %s405, 512, %s407, %s391, 128, 128, 8
        $region24: #{tpu_custom_call.1} parent=15 // pred_fallthru
          _
        // Predicated region
        $region25: #{tpu_custom_call.1} parent=15 // pred_check
          %p413 = pneg %p140
        $region26: #{tpu_custom_call.1} parent=15 // pred_check_branch
          %415 = sbr.rel (%p413) target = $region28
        $region27: #{tpu_custom_call.1} parent=15 // pred_region
          %s416 = sand.u32 %s32, 1
          %s417 = scalar_lea.sflag [#allocation9], %s416
          %s418 = sand.u32 %s130, 1
          %s419 = smul.addr %s418, 32
          %s420 = scalar_lea.vmem [#allocation10], %s419
          %s421 = smul.u32 %s39, 8
          %s422 = sadd.s32 %s421, %s40
          %p423 = scmp.lt.s32.totalorder %s422, 7
          %s424 = scalar_select %p423, %s422, 7
          %s425 = smul.u32 4, %s424
          %427 = vsyncadd %s417, 0
          %s428 = smul.addr %s425, 8
          %s429 = scalar_lea.hbm %s3, %s428
          %s430 = sshll.u32 %s429, 4
          %s431 = int_to_ptr.hbm [resolvable:$true] %s430
          %s432 = sshll.u32 %s420, 4
          %s433 = int_to_ptr.vmem [resolvable:$true] %s432
          %438 = dma.hbm_to_vmem [thread:$0]  %s431, 512, %s433, %s417, 128, 128, 8
        $region28: #{tpu_custom_call.1} parent=15 // pred_fallthru
          _
        // Predicated region
        $region29: #{tpu_custom_call.1} parent=15 // pred_check
          %p439 = pneg %p174
        $region30: #{tpu_custom_call.1} parent=15 // pred_check_branch
          %441 = sbr.rel (%p439) target = $region32
        $region31: #{tpu_custom_call.1} parent=15 // pred_region
          %s442 = sand.u32 %s32, 1
          %s443 = scalar_lea.sflag [#allocation12], %s442
          %s444 = sand.u32 %s164, 1
          %s445 = smul.addr %s444, 32
          %s446 = scalar_lea.vmem [#allocation11], %s445
          %s447 = smul.u32 %s39, 8
          %s448 = sadd.s32 %s447, %s40
          %p449 = scmp.lt.s32.totalorder %s448, 7
          %s450 = scalar_select %p449, %s448, 7
          %s451 = smul.u32 4, %s450
          %453 = vsyncadd %s443, 0
          %s454 = smul.addr %s451, 8
          %s455 = scalar_lea.hbm %s4, %s454
          %s456 = sshll.u32 %s455, 4
          %s457 = int_to_ptr.hbm [resolvable:$true] %s456
          %s458 = sshll.u32 %s446, 4
          %s459 = int_to_ptr.vmem [resolvable:$true] %s458
          %464 = dma.hbm_to_vmem [thread:$0]  %s457, 512, %s459, %s443, 128, 128, 8
        $region32: #{tpu_custom_call.1} parent=15 // pred_fallthru
          _
        // Predicated region
        $region33: #{tpu_custom_call.1} parent=15 // pred_check
          %p465 = pneg %p208
        $region34: #{tpu_custom_call.1} parent=15 // pred_check_branch
          %467 = sbr.rel (%p465) target = $region36
        $region35: #{tpu_custom_call.1} parent=15 // pred_region
          %s468 = sand.u32 %s32, 1
          %s469 = scalar_lea.sflag [#allocation12], %s468
          %s470 = sand.u32 %s198, 1
          %s471 = smul.addr %s470, 32
          %s472 = scalar_lea.vmem [#allocation13], %s471
          %s473 = smul.u32 %s39, 8
          %s474 = sadd.s32 %s473, %s40
          %p475 = scmp.lt.s32.totalorder %s474, 7
          %s476 = scalar_select %p475, %s474, 7
          %s477 = smul.u32 4, %s476
          %479 = vsyncadd %s469, 0
          %s480 = smul.addr %s477, 8
          %s481 = scalar_lea.hbm %s5, %s480
          %s482 = sshll.u32 %s481, 4
          %s483 = int_to_ptr.hbm [resolvable:$true] %s482
          %s484 = sshll.u32 %s472, 4
          %s485 = int_to_ptr.vmem [resolvable:$true] %s484
          %490 = dma.hbm_to_vmem [thread:$0]  %s483, 512, %s485, %s469, 128, 128, 8
        $region36: #{tpu_custom_call.1} parent=15 // pred_fallthru
          _
        // Predicated region
        $region37: #{tpu_custom_call.1} parent=15 // pred_check
          %p491 = pneg %p242
        $region38: #{tpu_custom_call.1} parent=15 // pred_check_branch
          %493 = sbr.rel (%p491) target = $region40
        $region39: #{tpu_custom_call.1} parent=15 // pred_region
          %s494 = sand.u32 %s32, 1
          %s495 = scalar_lea.sflag [#allocation15], %s494
          %s496 = sand.u32 %s232, 1
          %s497 = smul.addr %s496, 32
          %s498 = scalar_lea.vmem [#allocation14], %s497
          %s499 = smul.u32 %s39, 8
          %s500 = sadd.s32 %s499, %s40
          %p501 = scmp.lt.s32.totalorder %s500, 7
          %s502 = scalar_select %p501, %s500, 7
          %s503 = smul.u32 4, %s502
          %505 = vsyncadd %s495, 0
          %s506 = smul.addr %s503, 8
          %s507 = scalar_lea.hbm %s6, %s506
          %s508 = sshll.u32 %s507, 4
          %s509 = int_to_ptr.hbm [resolvable:$true] %s508
          %s510 = sshll.u32 %s498, 4
          %s511 = int_to_ptr.vmem [resolvable:$true] %s510
          %516 = dma.hbm_to_vmem [thread:$0]  %s509, 512, %s511, %s495, 128, 128, 8
        $region40: #{tpu_custom_call.1} parent=15 // pred_fallthru
          _
        // Predicated region
        $region41: #{tpu_custom_call.1} parent=15 // pred_check
          %p517 = pneg %p276
        $region42: #{tpu_custom_call.1} parent=15 // pred_check_branch
          %519 = sbr.rel (%p517) target = $region44
        $region43: #{tpu_custom_call.1} parent=15 // pred_region
          %s520 = sand.u32 %s32, 1
          %s521 = scalar_lea.sflag [#allocation15], %s520
          %s522 = sand.u32 %s266, 1
          %s523 = smul.addr %s522, 32
          %s524 = scalar_lea.vmem [#allocation16], %s523
          %s525 = smul.u32 %s39, 8
          %s526 = sadd.s32 %s525, %s40
          %p527 = scmp.lt.s32.totalorder %s526, 7
          %s528 = scalar_select %p527, %s526, 7
          %s529 = smul.u32 4, %s528
          %531 = vsyncadd %s521, 0
          %s532 = smul.addr %s529, 8
          %s533 = scalar_lea.hbm %s7, %s532
          %s534 = sshll.u32 %s533, 4
          %s535 = int_to_ptr.hbm [resolvable:$true] %s534
          %s536 = sshll.u32 %s524, 4
          %s537 = int_to_ptr.vmem [resolvable:$true] %s536
          %542 = dma.hbm_to_vmem [thread:$0]  %s535, 512, %s537, %s521, 128, 128, 8
        $region44: #{tpu_custom_call.1} parent=15 // pred_fallthru
          _
        // Predicated region
        $region45: #{tpu_custom_call.1} parent=15 // pred_check
          %p543 = pneg %p310
        $region46: #{tpu_custom_call.1} parent=15 // pred_check_branch
          %545 = sbr.rel (%p543) target = $region48
        $region47: #{tpu_custom_call.1} parent=15 // pred_region
          %s546 = sand.u32 %s300, 1
          %s547 = scalar_lea.sflag [#allocation18], %s546
          %s548 = sand.u32 %s300, 1
          %s549 = smul.addr %s548, 32
          %s550 = scalar_lea.vmem [#allocation17], %s549
          %s551 = smul.u32 %s39, 8
          %s552 = sadd.s32 %s551, %s40
          %p553 = scmp.lt.s32.totalorder %s552, 7
          %s554 = scalar_select %p553, %s552, 7
          %s555 = smul.u32 4, %s554
          %557 = vsyncadd %s547, 0
          %s558 = smul.addr %s555, 8
          %s559 = scalar_lea.hbm %s8, %s558
          %s560 = sshll.u32 %s559, 4
          %s561 = int_to_ptr.hbm [resolvable:$true] %s560
          %s562 = sshll.u32 %s550, 4
          %s563 = int_to_ptr.vmem [resolvable:$true] %s562
          %568 = dma.hbm_to_vmem [thread:$0]  %s561, 512, %s563, %s547, 128, 128, 8
        $region48: #{tpu_custom_call.1} parent=15 // pred_fallthru
          _
      $region16: #{tpu_custom_call.1} parent=5 // pred_fallthru
        _
      %p569 = scmp.le.s32.totalorder 1, %s32
      %p570 = scmp.lt.s32.totalorder %s32, 9
      %p571 = pnand %p569, %p570
      %p572 = pneg %p571
      // Predicated region
      $region49: #{tpu_custom_call.1} parent=5 // pred_check
        _
      $region50: #{tpu_custom_call.1} parent=5 // pred_check_branch
        %574 = sbr.rel (%p571) target = $region52
      $region51: #{tpu_custom_call.1} parent=5 // pred_region
        %s575 = ssub.s32 %s32, 1
        %s576 = sand.u32 %s65, 1
        %s577 = scalar_lea.sflag [#allocation6], %s576
        %s578 = sand.u32 %s65, 1
        %s579 = smul.addr %s578, 32
        %s580 = scalar_lea.vmem [#allocation5], %s579
        // Predicated region
        $region53: #{tpu_custom_call.1} parent=51 // pred_check
          %p581 = pneg %p78
        $region54: #{tpu_custom_call.1} parent=51 // pred_check_branch
          %583 = sbr.rel (%p581) target = $region56
        $region55: #{tpu_custom_call.1} parent=51 // pred_region
          %585 = dma.done %s577, 512
        $region56: #{tpu_custom_call.1} parent=51 // pred_fallthru
          _
        %s586 = sand.u32 %s37, 1
        %s587 = scalar_lea.sflag [#allocation9], %s586
        %s588 = sand.u32 %s99, 1
        %s589 = smul.addr %s588, 32
        %s590 = scalar_lea.vmem [#allocation8], %s589
        // Predicated region
        $region57: #{tpu_custom_call.1} parent=51 // pred_check
          %p591 = pneg %p112
        $region58: #{tpu_custom_call.1} parent=51 // pred_check_branch
          %593 = sbr.rel (%p591) target = $region60
        $region59: #{tpu_custom_call.1} parent=51 // pred_region
          %595 = dma.done %s587, 512
        $region60: #{tpu_custom_call.1} parent=51 // pred_fallthru
          _
        %s596 = sand.u32 %s37, 1
        %s597 = scalar_lea.sflag [#allocation9], %s596
        %s598 = sand.u32 %s133, 1
        %s599 = smul.addr %s598, 32
        %s600 = scalar_lea.vmem [#allocation10], %s599
        // Predicated region
        $region61: #{tpu_custom_call.1} parent=51 // pred_check
          %p601 = pneg %p146
        $region62: #{tpu_custom_call.1} parent=51 // pred_check_branch
          %603 = sbr.rel (%p601) target = $region64
        $region63: #{tpu_custom_call.1} parent=51 // pred_region
          %605 = dma.done %s597, 512
        $region64: #{tpu_custom_call.1} parent=51 // pred_fallthru
          _
        %s606 = sand.u32 %s37, 1
        %s607 = scalar_lea.sflag [#allocation12], %s606
        %s608 = sand.u32 %s167, 1
        %s609 = smul.addr %s608, 32
        %s610 = scalar_lea.vmem [#allocation11], %s609
        // Predicated region
        $region65: #{tpu_custom_call.1} parent=51 // pred_check
          %p611 = pneg %p180
        $region66: #{tpu_custom_call.1} parent=51 // pred_check_branch
          %613 = sbr.rel (%p611) target = $region68
        $region67: #{tpu_custom_call.1} parent=51 // pred_region
          %615 = dma.done %s607, 512
        $region68: #{tpu_custom_call.1} parent=51 // pred_fallthru
          _
        %s616 = sand.u32 %s37, 1
        %s617 = scalar_lea.sflag [#allocation12], %s616
        %s618 = sand.u32 %s201, 1
        %s619 = smul.addr %s618, 32
        %s620 = scalar_lea.vmem [#allocation13], %s619
        // Predicated region
        $region69: #{tpu_custom_call.1} parent=51 // pred_check
          %p621 = pneg %p214
        $region70: #{tpu_custom_call.1} parent=51 // pred_check_branch
          %623 = sbr.rel (%p621) target = $region72
        $region71: #{tpu_custom_call.1} parent=51 // pred_region
          %625 = dma.done %s617, 512
        $region72: #{tpu_custom_call.1} parent=51 // pred_fallthru
          _
        %s626 = sand.u32 %s37, 1
        %s627 = scalar_lea.sflag [#allocation15], %s626
        %s628 = sand.u32 %s235, 1
        %s629 = smul.addr %s628, 32
        %s630 = scalar_lea.vmem [#allocation14], %s629
        // Predicated region
        $region73: #{tpu_custom_call.1} parent=51 // pred_check
          %p631 = pneg %p248
        $region74: #{tpu_custom_call.1} parent=51 // pred_check_branch
          %633 = sbr.rel (%p631) target = $region76
        $region75: #{tpu_custom_call.1} parent=51 // pred_region
          %635 = dma.done %s627, 512
        $region76: #{tpu_custom_call.1} parent=51 // pred_fallthru
          _
        %s636 = sand.u32 %s37, 1
        %s637 = scalar_lea.sflag [#allocation15], %s636
        %s638 = sand.u32 %s269, 1
        %s639 = smul.addr %s638, 32
        %s640 = scalar_lea.vmem [#allocation16], %s639
        // Predicated region
        $region77: #{tpu_custom_call.1} parent=51 // pred_check
          %p641 = pneg %p282
        $region78: #{tpu_custom_call.1} parent=51 // pred_check_branch
          %643 = sbr.rel (%p641) target = $region80
        $region79: #{tpu_custom_call.1} parent=51 // pred_region
          %645 = dma.done %s637, 512
        $region80: #{tpu_custom_call.1} parent=51 // pred_fallthru
          _
        %s646 = sand.u32 %s303, 1
        %s647 = scalar_lea.sflag [#allocation18], %s646
        %s648 = sand.u32 %s303, 1
        %s649 = smul.addr %s648, 32
        %s650 = scalar_lea.vmem [#allocation17], %s649
        // Predicated region
        $region81: #{tpu_custom_call.1} parent=51 // pred_check
          %p651 = pneg %p316
        $region82: #{tpu_custom_call.1} parent=51 // pred_check_branch
          %653 = sbr.rel (%p651) target = $region84
        $region83: #{tpu_custom_call.1} parent=51 // pred_region
          %655 = dma.done %s647, 512
        $region84: #{tpu_custom_call.1} parent=51 // pred_fallthru
          _
        %s656 = sand.u32 %s65, 1
        %s657 = scalar_lea.sflag [#allocation6], %s656
        %s658 = sand.u32 %s65, 1
        %s659 = smul.addr %s658, 32
        %s660 = scalar_lea.vmem [#allocation5], %s659
        %p661 = pneg %p78
        %p662 = pneg %p75
        %s663 = sand.u32 %s37, 1
        %s664 = scalar_lea.sflag [#allocation9], %s663
        %s665 = sand.u32 %s99, 1
        %s666 = smul.addr %s665, 32
        %s667 = scalar_lea.vmem [#allocation8], %s666
        %p668 = pneg %p112
        %p669 = pneg %p109
        %s670 = sand.u32 %s37, 1
        %s671 = scalar_lea.sflag [#allocation9], %s670
        %s672 = sand.u32 %s133, 1
        %s673 = smul.addr %s672, 32
        %s674 = scalar_lea.vmem [#allocation10], %s673
        %p675 = pneg %p146
        %p676 = pneg %p143
        %s677 = sand.u32 %s37, 1
        %s678 = scalar_lea.sflag [#allocation12], %s677
        %s679 = sand.u32 %s167, 1
        %s680 = smul.addr %s679, 32
        %s681 = scalar_lea.vmem [#allocation11], %s680
        %p682 = pneg %p180
        %p683 = pneg %p177
        %s684 = sand.u32 %s37, 1
        %s685 = scalar_lea.sflag [#allocation12], %s684
        %s686 = sand.u32 %s201, 1
        %s687 = smul.addr %s686, 32
        %s688 = scalar_lea.vmem [#allocation13], %s687
        %p689 = pneg %p214
        %p690 = pneg %p211
        %s691 = sand.u32 %s37, 1
        %s692 = scalar_lea.sflag [#allocation15], %s691
        %s693 = sand.u32 %s235, 1
        %s694 = smul.addr %s693, 32
        %s695 = scalar_lea.vmem [#allocation14], %s694
        %p696 = pneg %p248
        %p697 = pneg %p245
        %s698 = sand.u32 %s37, 1
        %s699 = scalar_lea.sflag [#allocation15], %s698
        %s700 = sand.u32 %s269, 1
        %s701 = smul.addr %s700, 32
        %s702 = scalar_lea.vmem [#allocation16], %s701
        %p703 = pneg %p282
        %p704 = pneg %p279
        %s705 = sand.u32 %s303, 1
        %s706 = scalar_lea.sflag [#allocation18], %s705
        %s707 = sand.u32 %s303, 1
        %s708 = smul.addr %s707, 32
        %s709 = scalar_lea.vmem [#allocation17], %s708
        %p710 = pneg %p316
        %p711 = pneg %p313
        %p712 = pneg %p342
        %p713 = pneg %p339
        %s714 = smul.u32 %s41, 8
        %s715 = sadd.s32 %s714, %s42
        %p716 = scmp.lt.s32.totalorder %s715, 7
        %s717 = scalar_select %p716, %s715, 7
        %s718 = smul.u32 4, %s717
        %s719 = smul.u32 %s41, 8
        %s720 = sadd.s32 %s719, %s42
        %p721 = scmp.lt.s32.totalorder %s720, 7
        %s722 = scalar_select %p721, %s720, 7
        %s723 = smul.u32 4, %s722
        %s724 = smul.u32 %s41, 8
        %s725 = sadd.s32 %s724, %s42
        %p726 = scmp.lt.s32.totalorder %s725, 7
        %s727 = scalar_select %p726, %s725, 7
        %s728 = smul.u32 4, %s727
        %s729 = smul.u32 %s41, 8
        %s730 = sadd.s32 %s729, %s42
        %p731 = scmp.lt.s32.totalorder %s730, 7
        %s732 = scalar_select %p731, %s730, 7
        %s733 = smul.u32 4, %s732
        %s734 = smul.u32 %s41, 8
        %s735 = sadd.s32 %s734, %s42
        %p736 = scmp.lt.s32.totalorder %s735, 7
        %s737 = scalar_select %p736, %s735, 7
        %s738 = smul.u32 4, %s737
        %s739 = smul.u32 %s41, 8
        %s740 = sadd.s32 %s739, %s42
        %p741 = scmp.lt.s32.totalorder %s740, 7
        %s742 = scalar_select %p741, %s740, 7
        %s743 = smul.u32 4, %s742
        %s744 = smul.u32 %s41, 8
        %s745 = sadd.s32 %s744, %s42
        %p746 = scmp.lt.s32.totalorder %s745, 7
        %s747 = scalar_select %p746, %s745, 7
        %s748 = smul.u32 4, %s747
        %s749 = smul.u32 %s41, 8
        %s750 = sadd.s32 %s749, %s42
        %p751 = scmp.lt.s32.totalorder %s750, 7
        %s752 = scalar_select %p751, %s750, 7
        %s753 = smul.u32 4, %s752
        %p754 = scmp.eq.s32.totalorder %s42, 0
        // Predicated region
        $region85: #{tpu_custom_call.1} parent=51 // pred_check
          %p755 = pneg %p754
        $region86: #{tpu_custom_call.1} parent=51 // pred_check_branch
          %757 = sbr.rel (%p755) target = $region88
        $region87: #{tpu_custom_call.1} parent=51 // pred_region
          %758 = vst [vmem:[#allocation2] sm:$0xff] 0.0
          %759 = vst [vmem:[#allocation2 + $0x8] sm:$0xff] 0.0
          %760 = vst [vmem:[#allocation2 + $0x10] sm:$0xff] 0.0
          %761 = vst [vmem:[#allocation2 + $0x18] sm:$0xff] 0.0
        $region88: #{tpu_custom_call.1} parent=51 // pred_fallthru
          _
        %v762 = vld [vmem:[%s580] sm:$0xff]
        %v763 = vld [vmem:[%s580 + $0x8] sm:$0xff]
        %v764 = vld [vmem:[%s580 + $0x10] sm:$0xff]
        %v765 = vld [vmem:[%s580 + $0x18] sm:$0xff]
        %v766 = vld [vmem:[%s590] sm:$0xff]
        %v767 = vld [vmem:[%s590 + $0x8] sm:$0xff]
        %v768 = vld [vmem:[%s590 + $0x10] sm:$0xff]
        %v769 = vld [vmem:[%s590 + $0x18] sm:$0xff]
        %v770 = vmax.f32 %v762, %v766
        %v771 = vmax.f32 %v763, %v767
        %v772 = vmax.f32 %v764, %v768
        %v773 = vmax.f32 %v765, %v769
        %v774 = vld [vmem:[%s600] sm:$0xff]
        %v775 = vld [vmem:[%s600 + $0x8] sm:$0xff]
        %v776 = vld [vmem:[%s600 + $0x10] sm:$0xff]
        %v777 = vld [vmem:[%s600 + $0x18] sm:$0xff]
        %v778 = vmax.f32 %v770, %v774
        %v779 = vmax.f32 %v771, %v775
        %v780 = vmax.f32 %v772, %v776
        %v781 = vmax.f32 %v773, %v777
        %v782 = vld [vmem:[%s610] sm:$0xff]
        %v783 = vld [vmem:[%s610 + $0x8] sm:$0xff]
        %v784 = vld [vmem:[%s610 + $0x10] sm:$0xff]
        %v785 = vld [vmem:[%s610 + $0x18] sm:$0xff]
        %v786 = vmax.f32 %v778, %v782
        %v787 = vmax.f32 %v779, %v783
        %v788 = vmax.f32 %v780, %v784
        %v789 = vmax.f32 %v781, %v785
        %v790 = vld [vmem:[%s620] sm:$0xff]
        %v791 = vld [vmem:[%s620 + $0x8] sm:$0xff]
        %v792 = vld [vmem:[%s620 + $0x10] sm:$0xff]
        %v793 = vld [vmem:[%s620 + $0x18] sm:$0xff]
        %v794 = vmax.f32 %v786, %v790
        %v795 = vmax.f32 %v787, %v791
        %v796 = vmax.f32 %v788, %v792
        %v797 = vmax.f32 %v789, %v793
        %v798 = vld [vmem:[%s630] sm:$0xff]
        %v799 = vld [vmem:[%s630 + $0x8] sm:$0xff]
        %v800 = vld [vmem:[%s630 + $0x10] sm:$0xff]
        %v801 = vld [vmem:[%s630 + $0x18] sm:$0xff]
        %v802 = vmax.f32 %v794, %v798
        %v803 = vmax.f32 %v795, %v799
        %v804 = vmax.f32 %v796, %v800
        %v805 = vmax.f32 %v797, %v801
        %v806 = vld [vmem:[%s640] sm:$0xff]
        %v807 = vld [vmem:[%s640 + $0x8] sm:$0xff]
        %v808 = vld [vmem:[%s640 + $0x10] sm:$0xff]
        %v809 = vld [vmem:[%s640 + $0x18] sm:$0xff]
        %v810 = vmax.f32 %v802, %v806
        %v811 = vmax.f32 %v803, %v807
        %v812 = vmax.f32 %v804, %v808
        %v813 = vmax.f32 %v805, %v809
        %v814 = vld [vmem:[%s650] sm:$0xff]
        %v815 = vld [vmem:[%s650 + $0x8] sm:$0xff]
        %v816 = vld [vmem:[%s650 + $0x10] sm:$0xff]
        %v817 = vld [vmem:[%s650 + $0x18] sm:$0xff]
        %v818 = vmax.f32 %v810, %v814
        %v819 = vmax.f32 %v811, %v815
        %v820 = vmax.f32 %v812, %v816
        %v821 = vmax.f32 %v813, %v817
        %s822 = sld [smem:[#allocation4]]
        %v823 = vsub.f32 %v762, %v818
        %v824 = vsub.f32 %v763, %v819
        %v825 = vsub.f32 %v764, %v820
        %v826 = vsub.f32 %v765, %v821
        %v827 = vmul.f32 %v823, 1.442695
        %v828 = vpow.pop %v827
        %v829 = vmul.f32 %v824, 1.442695
        %v830 = vpow.pop %v829
        %v831 = vmul.f32 %v825, 1.442695
        %v832 = vpow.pop %v831
        %v833 = vmul.f32 %v826, 1.442695
        %v834 = vpow.pop %v833
        %v835 = vadd.f32 %v828, 0.0
        %v836 = vadd.f32 %v830, 0.0
        %v837 = vadd.f32 %v832, 0.0
        %v838 = vadd.f32 %v834, 0.0
        %p839 = scmp.eq.s32.totalorder %s822, 0
        %s840 = scalar_select %p839, 1, 0
        %s841 = scvt.s32.f32 %s840
        %v842 = vstv %s841
        %v843 = vmul.f32 %v842, %v762
        %v844 = vmul.f32 %v842, %v763
        %v845 = vmul.f32 %v842, %v764
        %v846 = vmul.f32 %v842, %v765
        %v847 = vadd.f32 %v843, 0.0
        %v848 = vadd.f32 %v844, 0.0
        %v849 = vadd.f32 %v845, 0.0
        %v850 = vadd.f32 %v846, 0.0
        %v851 = vsub.f32 %v766, %v818
        %v852 = vsub.f32 %v767, %v819
        %v853 = vsub.f32 %v768, %v820
        %v854 = vsub.f32 %v769, %v821
        %v855 = vmul.f32 %v851, 1.442695
        %v856 = vpow.pop %v855
        %v857 = vmul.f32 %v852, 1.442695
        %v858 = vpow.pop %v857
        %v859 = vmul.f32 %v853, 1.442695
        %v860 = vpow.pop %v859
        %v861 = vmul.f32 %v854, 1.442695
        %v862 = vpow.pop %v861
        %v863 = vadd.f32 %v835, %v856
        %v864 = vadd.f32 %v836, %v858
        %v865 = vadd.f32 %v837, %v860
        %v866 = vadd.f32 %v838, %v862
        %p867 = scmp.eq.s32.totalorder %s822, 1
        %s868 = scalar_select %p867, 1, 0
        %s869 = scvt.s32.f32 %s868
        %v870 = vstv %s869
        %v871 = vmul.f32 %v870, %v766
        %v872 = vmul.f32 %v870, %v767
        %v873 = vmul.f32 %v870, %v768
        %v874 = vmul.f32 %v870, %v769
        %v875 = vadd.f32 %v847, %v871
        %v876 = vadd.f32 %v848, %v872
        %v877 = vadd.f32 %v849, %v873
        %v878 = vadd.f32 %v850, %v874
        %v879 = vsub.f32 %v774, %v818
        %v880 = vsub.f32 %v775, %v819
        %v881 = vsub.f32 %v776, %v820
        %v882 = vsub.f32 %v777, %v821
        %v883 = vmul.f32 %v879, 1.442695
        %v884 = vpow.pop %v883
        %v885 = vmul.f32 %v880, 1.442695
        %v886 = vpow.pop %v885
        %v887 = vmul.f32 %v881, 1.442695
        %v888 = vpow.pop %v887
        %v889 = vmul.f32 %v882, 1.442695
        %v890 = vpow.pop %v889
        %v891 = vadd.f32 %v863, %v884
        %v892 = vadd.f32 %v864, %v886
        %v893 = vadd.f32 %v865, %v888
        %v894 = vadd.f32 %v866, %v890
        %p895 = scmp.eq.s32.totalorder %s822, 2
        %s896 = scalar_select %p895, 1, 0
        %s897 = scvt.s32.f32 %s896
        %v898 = vstv %s897
        %v899 = vmul.f32 %v898, %v774
        %v900 = vmul.f32 %v898, %v775
        %v901 = vmul.f32 %v898, %v776
        %v902 = vmul.f32 %v898, %v777
        %v903 = vadd.f32 %v875, %v899
        %v904 = vadd.f32 %v876, %v900
        %v905 = vadd.f32 %v877, %v901
        %v906 = vadd.f32 %v878, %v902
        %v907 = vsub.f32 %v782, %v818
        %v908 = vsub.f32 %v783, %v819
        %v909 = vsub.f32 %v784, %v820
        %v910 = vsub.f32 %v785, %v821
        %v911 = vmul.f32 %v907, 1.442695
        %v912 = vpow.pop %v911
        %v913 = vmul.f32 %v908, 1.442695
        %v914 = vpow.pop %v913
        %v915 = vmul.f32 %v909, 1.442695
        %v916 = vpow.pop %v915
        %v917 = vmul.f32 %v910, 1.442695
        %v918 = vpow.pop %v917
        %v919 = vadd.f32 %v891, %v912
        %v920 = vadd.f32 %v892, %v914
        %v921 = vadd.f32 %v893, %v916
        %v922 = vadd.f32 %v894, %v918
        %p923 = scmp.eq.s32.totalorder %s822, 3
        %s924 = scalar_select %p923, 1, 0
        %s925 = scvt.s32.f32 %s924
        %v926 = vstv %s925
        %v927 = vmul.f32 %v926, %v782
        %v928 = vmul.f32 %v926, %v783
        %v929 = vmul.f32 %v926, %v784
        %v930 = vmul.f32 %v926, %v785
        %v931 = vadd.f32 %v903, %v927
        %v932 = vadd.f32 %v904, %v928
        %v933 = vadd.f32 %v905, %v929
        %v934 = vadd.f32 %v906, %v930
        %v935 = vsub.f32 %v790, %v818
        %v936 = vsub.f32 %v791, %v819
        %v937 = vsub.f32 %v792, %v820
        %v938 = vsub.f32 %v793, %v821
        %v939 = vmul.f32 %v935, 1.442695
        %v940 = vpow.pop %v939
        %v941 = vmul.f32 %v936, 1.442695
        %v942 = vpow.pop %v941
        %v943 = vmul.f32 %v937, 1.442695
        %v944 = vpow.pop %v943
        %v945 = vmul.f32 %v938, 1.442695
        %v946 = vpow.pop %v945
        %v947 = vadd.f32 %v919, %v940
        %v948 = vadd.f32 %v920, %v942
        %v949 = vadd.f32 %v921, %v944
        %v950 = vadd.f32 %v922, %v946
        %p951 = scmp.eq.s32.totalorder %s822, 4
        %s952 = scalar_select %p951, 1, 0
        %s953 = scvt.s32.f32 %s952
        %v954 = vstv %s953
        %v955 = vmul.f32 %v954, %v790
        %v956 = vmul.f32 %v954, %v791
        %v957 = vmul.f32 %v954, %v792
        %v958 = vmul.f32 %v954, %v793
        %v959 = vadd.f32 %v931, %v955
        %v960 = vadd.f32 %v932, %v956
        %v961 = vadd.f32 %v933, %v957
        %v962 = vadd.f32 %v934, %v958
        %v963 = vsub.f32 %v798, %v818
        %v964 = vsub.f32 %v799, %v819
        %v965 = vsub.f32 %v800, %v820
        %v966 = vsub.f32 %v801, %v821
        %v967 = vmul.f32 %v963, 1.442695
        %v968 = vpow.pop %v967
        %v969 = vmul.f32 %v964, 1.442695
        %v970 = vpow.pop %v969
        %v971 = vmul.f32 %v965, 1.442695
        %v972 = vpow.pop %v971
        %v973 = vmul.f32 %v966, 1.442695
        %v974 = vpow.pop %v973
        %v975 = vadd.f32 %v947, %v968
        %v976 = vadd.f32 %v948, %v970
        %v977 = vadd.f32 %v949, %v972
        %v978 = vadd.f32 %v950, %v974
        %p979 = scmp.eq.s32.totalorder %s822, 5
        %s980 = scalar_select %p979, 1, 0
        %s981 = scvt.s32.f32 %s980
        %v982 = vstv %s981
        %v983 = vmul.f32 %v982, %v798
        %v984 = vmul.f32 %v982, %v799
        %v985 = vmul.f32 %v982, %v800
        %v986 = vmul.f32 %v982, %v801
        %v987 = vadd.f32 %v959, %v983
        %v988 = vadd.f32 %v960, %v984
        %v989 = vadd.f32 %v961, %v985
        %v990 = vadd.f32 %v962, %v986
        %v991 = vsub.f32 %v806, %v818
        %v992 = vsub.f32 %v807, %v819
        %v993 = vsub.f32 %v808, %v820
        %v994 = vsub.f32 %v809, %v821
        %v995 = vmul.f32 %v991, 1.442695
        %v996 = vpow.pop %v995
        %v997 = vmul.f32 %v992, 1.442695
        %v998 = vpow.pop %v997
        %v999 = vmul.f32 %v993, 1.442695
        %v1000 = vpow.pop %v999
        %v1001 = vmul.f32 %v994, 1.442695
        %v1002 = vpow.pop %v1001
        %v1003 = vadd.f32 %v975, %v996
        %v1004 = vadd.f32 %v976, %v998
        %v1005 = vadd.f32 %v977, %v1000
        %v1006 = vadd.f32 %v978, %v1002
        %p1007 = scmp.eq.s32.totalorder %s822, 6
        %s1008 = scalar_select %p1007, 1, 0
        %s1009 = scvt.s32.f32 %s1008
        %v1010 = vstv %s1009
        %v1011 = vmul.f32 %v1010, %v806
        %v1012 = vmul.f32 %v1010, %v807
        %v1013 = vmul.f32 %v1010, %v808
        %v1014 = vmul.f32 %v1010, %v809
        %v1015 = vadd.f32 %v987, %v1011
        %v1016 = vadd.f32 %v988, %v1012
        %v1017 = vadd.f32 %v989, %v1013
        %v1018 = vadd.f32 %v990, %v1014
        %v1019 = vsub.f32 %v814, %v818
        %v1020 = vsub.f32 %v815, %v819
        %v1021 = vsub.f32 %v816, %v820
        %v1022 = vsub.f32 %v817, %v821
        %v1023 = vmul.f32 %v1019, 1.442695
        %v1024 = vpow.pop %v1023
        %v1025 = vmul.f32 %v1020, 1.442695
        %v1026 = vpow.pop %v1025
        %v1027 = vmul.f32 %v1021, 1.442695
        %v1028 = vpow.pop %v1027
        %v1029 = vmul.f32 %v1022, 1.442695
        %v1030 = vpow.pop %v1029
        %v1031 = vadd.f32 %v1003, %v1024
        %v1032 = vadd.f32 %v1004, %v1026
        %v1033 = vadd.f32 %v1005, %v1028
        %v1034 = vadd.f32 %v1006, %v1030
        %p1035 = scmp.eq.s32.totalorder %s822, 7
        %s1036 = scalar_select %p1035, 1, 0
        %s1037 = scvt.s32.f32 %s1036
        %v1038 = vstv %s1037
        %v1039 = vmul.f32 %v1038, %v814
        %v1040 = vmul.f32 %v1038, %v815
        %v1041 = vmul.f32 %v1038, %v816
        %v1042 = vmul.f32 %v1038, %v817
        %v1043 = vadd.f32 %v1015, %v1039
        %v1044 = vadd.f32 %v1016, %v1040
        %v1045 = vadd.f32 %v1017, %v1041
        %v1046 = vadd.f32 %v1018, %v1042
        %v1047 = vsub.f32 %v818, %v1043
        %v1048 = vsub.f32 %v819, %v1044
        %v1049 = vsub.f32 %v820, %v1045
        %v1050 = vsub.f32 %v821, %v1046
        %v1051 = vlog2.pop %v1031
        %v1052 = vmul.f32 %v1051, 0.6931472
        %v1053 = vlog2.pop %v1032
        %v1054 = vmul.f32 %v1053, 0.6931472
        %v1055 = vlog2.pop %v1033
        %v1056 = vmul.f32 %v1055, 0.6931472
        %v1057 = vlog2.pop %v1034
        %v1058 = vmul.f32 %v1057, 0.6931472
        %v1059 = vadd.f32 %v1047, %v1052
        %v1060 = vadd.f32 %v1048, %v1054
        %v1061 = vadd.f32 %v1049, %v1056
        %v1062 = vadd.f32 %v1050, %v1058
        %v1063 = vlaneseq
        %v1064 = vand.u32 %v1063, 127
        %v1065 = vand.u32 %v1064, 1
        %vm1066 = vcmp.eq.s32.totalorder %v1065, 1
        %s1067 = smul.u32 %s41, 8
        %s1068 = sadd.s32 %s1067, %s42
        %p1069 = scmp.lt.s32.totalorder %s1068, 7
        // Predicated region
        $region89: #{tpu_custom_call.1} parent=51 // pred_check
          %p1070 = pneg %p1069
        $region90: #{tpu_custom_call.1} parent=51 // pred_check_branch
          %1072 = sbr.rel (%p1070) target = $region92
        $region91: #{tpu_custom_call.1} parent=51 // pred_region
          %v1073 = vld [vmem:[#allocation2] sm:$0xff]
          %v1074 = vld [vmem:[#allocation2 + $0x8] sm:$0xff]
          %v1075 = vld [vmem:[#allocation2 + $0x10] sm:$0xff]
          %v1076 = vld [vmem:[#allocation2 + $0x18] sm:$0xff]
          %v1077 = vsel %vm1066, %v1059, 0.0
          %v1078 = vsel %vm1066, %v1060, 0.0
          %v1079 = vsel %vm1066, %v1061, 0.0
          %v1080 = vsel %vm1066, %v1062, 0.0
          %v1081 = vadd.f32 %v1073, %v1077
          %v1082 = vadd.f32 %v1074, %v1078
          %v1083 = vadd.f32 %v1075, %v1079
          %v1084 = vadd.f32 %v1076, %v1080
          %1085 = vst [vmem:[#allocation2] sm:$0xff] %v1081
          %1086 = vst [vmem:[#allocation2 + $0x8] sm:$0xff] %v1082
          %1087 = vst [vmem:[#allocation2 + $0x10] sm:$0xff] %v1083
          %1088 = vst [vmem:[#allocation2 + $0x18] sm:$0xff] %v1084
        $region92: #{tpu_custom_call.1} parent=51 // pred_fallthru
          _
        %p1089 = scmp.ge.s32.totalorder %s1068, 7
        // Predicated region
        $region93: #{tpu_custom_call.1} parent=51 // pred_check
          %p1090 = pneg %p1089
        $region94: #{tpu_custom_call.1} parent=51 // pred_check_branch
          %1092 = sbr.rel (%p1090) target = $region96
        $region95: #{tpu_custom_call.1} parent=51 // pred_region
          %v1093 = vlaneseq
          %v1094 = vshrl.u32 %v1093, 7
          %v1095 = vadd.s32 %v1094, 8
          %v1096 = vadd.s32 %v1094, 16
          %v1097 = vadd.s32 %v1094, 24
          %s1098 = smul.u32 %s1068, 32
          %v1099 = vstv %s1098
          %v1100 = vadd.s32 %v1099, %v1094
          %v1101 = vadd.s32 %v1099, %v1095
          %v1102 = vadd.s32 %v1099, %v1096
          %v1103 = vadd.s32 %v1099, %v1097
          %v1104 = vmul.u32 %v1100, 128
          %v1105 = vmul.u32 %v1101, 128
          %v1106 = vmul.u32 %v1102, 128
          %v1107 = vmul.u32 %v1103, 128
          %v1108 = vadd.s32 %v1104, %v1064
          %v1109 = vadd.s32 %v1105, %v1064
          %v1110 = vadd.s32 %v1106, %v1064
          %v1111 = vadd.s32 %v1107, %v1064
          %vm1112 = vcmp.lt.s32.totalorder %v1108, 32768
          %vm1113 = vcmp.lt.s32.totalorder %v1109, 32768
          %vm1114 = vcmp.lt.s32.totalorder %v1110, 32768
          %vm1115 = vcmp.lt.s32.totalorder %v1111, 32768
          %vm1116 = vmand %vm1066, %vm1112
          %vm1117 = vmand %vm1066, %vm1113
          %vm1118 = vmand %vm1066, %vm1114
          %vm1119 = vmand %vm1066, %vm1115
          %v1120 = vld [vmem:[#allocation2] sm:$0xff]
          %v1121 = vld [vmem:[#allocation2 + $0x8] sm:$0xff]
          %v1122 = vld [vmem:[#allocation2 + $0x10] sm:$0xff]
          %v1123 = vld [vmem:[#allocation2 + $0x18] sm:$0xff]
          %v1124 = vsel %vm1116, %v1059, 0.0
          %v1125 = vsel %vm1117, %v1060, 0.0
          %v1126 = vsel %vm1118, %v1061, 0.0
          %v1127 = vsel %vm1119, %v1062, 0.0
          %v1128 = vadd.f32 %v1120, %v1124
          %v1129 = vadd.f32 %v1121, %v1125
          %v1130 = vadd.f32 %v1122, %v1126
          %v1131 = vadd.f32 %v1123, %v1127
          %1132 = vst [vmem:[#allocation2] sm:$0xff] %v1128
          %1133 = vst [vmem:[#allocation2 + $0x8] sm:$0xff] %v1129
          %1134 = vst [vmem:[#allocation2 + $0x10] sm:$0xff] %v1130
          %1135 = vst [vmem:[#allocation2 + $0x18] sm:$0xff] %v1131
        $region96: #{tpu_custom_call.1} parent=51 // pred_fallthru
          _
        %p1136 = scmp.eq.s32.totalorder %s42, 7
        // Predicated region
        $region97: #{tpu_custom_call.1} parent=51 // pred_check
          %p1137 = pneg %p1136
        $region98: #{tpu_custom_call.1} parent=51 // pred_check_branch
          %1139 = sbr.rel (%p1137) target = $region100
        $region99: #{tpu_custom_call.1} parent=51 // pred_region
          %v1140 = vld [vmem:[#allocation2] sm:$0xff]
          %v1141 = vld [vmem:[#allocation2 + $0x8] sm:$0xff]
          %v1142 = vld [vmem:[#allocation2 + $0x10] sm:$0xff]
          %v1143 = vld [vmem:[#allocation2 + $0x18] sm:$0xff]
          %1144 = vst [vmem:[#allocation19] sm:$0xff] %v1140
          %1145 = vst [vmem:[#allocation19 + $0x8] sm:$0xff] %v1141
          %1146 = vst [vmem:[#allocation19 + $0x10] sm:$0xff] %v1142
          %1147 = vst [vmem:[#allocation19 + $0x18] sm:$0xff] %v1143
        $region100: #{tpu_custom_call.1} parent=51 // pred_fallthru
          _
        // Predicated region
        $region101: #{tpu_custom_call.1} parent=51 // pred_check
          %p1148 = pneg %p339
        $region102: #{tpu_custom_call.1} parent=51 // pred_check_branch
          %1150 = sbr.rel (%p1148) target = $region104
        $region103: #{tpu_custom_call.1} parent=51 // pred_region
          %1152 = vsyncadd [#allocation7], 0
          %s1153 = smul.addr %s41, 4
          %s1154 = smul.addr %s1153, 8
          %s1155 = scalar_lea.hbm %s9, %s1154
          %s1156 = sshll.u32 [#allocation19], 4
          %s1157 = int_to_ptr.vmem [resolvable:$true] %s1156
          %s1158 = sshll.u32 %s1155, 4
          %s1159 = int_to_ptr.hbm [resolvable:$true] %s1158
          %1164 = dma.vmem_to_hbm [thread:$0]  %s1157, 512, %s1159, [#allocation7], 128, 128, 8
        $region104: #{tpu_custom_call.1} parent=51 // pred_fallthru
          _
        // Predicated region
        $region105: #{tpu_custom_call.1} parent=51 // pred_check
          %p1165 = pneg %p339
        $region106: #{tpu_custom_call.1} parent=51 // pred_check_branch
          %1167 = sbr.rel (%p1165) target = $region108
        $region107: #{tpu_custom_call.1} parent=51 // pred_region
          %1169 = dma.done [#allocation7], 512
        $region108: #{tpu_custom_call.1} parent=51 // pred_fallthru
          _
      $region52: #{tpu_custom_call.1} parent=5 // pred_fallthru
        _
      %p1170 = scmp.le.s32.totalorder 2, %s32
      // Predicated region
      $region109: #{tpu_custom_call.1} parent=5 // pred_check
        %p1171 = pneg %p1170
      $region110: #{tpu_custom_call.1} parent=5 // pred_check_branch
        %1173 = sbr.rel (%p1171) target = $region112
      $region111: #{tpu_custom_call.1} parent=5 // pred_region
        %s1174 = ssub.s32 %s32, 2
      $region112: #{tpu_custom_call.1} parent=5 // pred_fallthru
        _
    $region6: #{tpu_custom_call.1} parent=1 // loop_footer
      %s36 = sadd.s32 1, %s32
    $region7: #{tpu_custom_call.1} parent=1 // loop_footer_branch
      %31 = sbr.rel target = $region3
    $region8: #{tpu_custom_call.1} parent=1 // loop_exit
      _
    %1175 = vsyncpa [#allocation6], 1
    %s1176 = scalar_lea.sflag [#allocation6], 1
    %1177 = vsyncpa %s1176, 1
    %1178 = vsyncpa [#allocation9], 1
    %s1179 = scalar_lea.sflag [#allocation9], 1
    %1180 = vsyncpa %s1179, 1
    %1181 = vsyncpa [#allocation12], 1
    %s1182 = scalar_lea.sflag [#allocation12], 1
    %1183 = vsyncpa %s1182, 1
    %1184 = vsyncpa [#allocation15], 1
    %s1185 = scalar_lea.sflag [#allocation15], 1
    %1186 = vsyncpa %s1185, 1
    %1187 = vsyncpa [#allocation18], 1
    %s1188 = scalar_lea.sflag [#allocation18], 1
    %1189 = vsyncpa %s1188, 1
    %1190 = vsyncpa [#allocation7], 1
    %s1191 = scalar_lea.sflag [#allocation7], 1
    %1192 = vsyncpa %s1191, 1

</llo_original>
